<compile_context>
chip_gen: v7x
topology: tpu7x:2x2x1
jax: 0.10.0
libtpu: 0.0.40
codegen_flags: <defaults>
</compile_context>

<pallas_src>
import functools

import jax
import jax.numpy as jnp
import numpy as np
from jax import lax
from jax.experimental import pallas as pl
from jax.experimental.pallas import tpu as pltpu


def _round_up(x, m):
    return (x + m - 1) // m * m


# ----------------------------------------------------------------------------
# Pallas kernel: im2col patch (built once per image) + one MXU matmul
#                + folded-BN affine + ReLU, compact lane-dense bf16 output.
# ----------------------------------------------------------------------------
def _conv_bn_relu_kernel(x_ref, w_ref, scale_ref, bias_ref, o_ref, patch_ref,
                         *, kh, kw, H, W, build_every_step):
    # x_ref:     (1, Hp, Wp, Cin)  bf16, spatially pre-padded image (resident)
    # w_ref:     (tn, K)           bf16, K = kh*kw*Cin, tap order (j, i, c)
    # scale_ref: (tn, 1)  f32      gamma / sqrt(var + eps)
    # bias_ref:  (tn, 1)  f32      (conv_bias - mean) * scale + beta
    # o_ref:     (1, tn, H*W)      bf16, H*W is the lane-dense last dim
    # patch_ref: (K, H*W)          bf16 VMEM scratch, persists across grid steps
    cin = x_ref.shape[3]

    def build_patch():
        x = x_ref[0]                                   # (Hp, Wp, Cin) bf16
        cols = []
        for j in range(kw):                            # kw sublane shifts total
            xj = x[:, j:j + W, :]                      # (Hp, W, Cin)
            for i in range(kh):                        # leading-dim slice: free
                cols.append(xj[i:i + H].reshape(H * W, cin))
        # (H*W, K) -> transpose once so the matmul is a vanilla (M,K)x(K,N)
        patch_ref[...] = jnp.concatenate(cols, axis=-1).T

    if build_every_step:
        build_patch()                                  # image changes every step
    else:
        # image is resident across the inner (Cout-tile) axis: build once per image
        pl.when(pl.program_id(1) == 0)(build_patch)

    # Single K = kh*kw*Cin contraction on the MXU, f32 accumulate.
    acc = jnp.dot(w_ref[...], patch_ref[...],
                  preferred_element_type=jnp.float32)  # (tn, H*W)
    y = acc * scale_ref[...] + bias_ref[...]           # f32 epilogue on the VPU
    o_ref[0] = jnp.maximum(y, 0.0).astype(o_ref.dtype)


# ----------------------------------------------------------------------------
# Wrapper: NCHW in / NCHW out, matching the PyTorch module's forward semantics.
# ----------------------------------------------------------------------------
def conv_bn_relu(x_nchw, params, *, kernel_size, eps=1e-5,
                 out_dtype=jnp.bfloat16):
    """params: conv_w (Cout,Cin,kh,kw), conv_b (Cout,), bn_gamma, bn_beta,
    bn_mean, bn_var (Cout,). Eval-mode BN folded; output cast to out_dtype."""
    N, Cin, H, W = x_nchw.shape
    kh = kw = kernel_size
    assert kernel_size % 2 == 1, "only odd 'same' kernels supported"
    Cout = params["conv_w"].shape[0]
    assert params["conv_w"].shape[1] == Cin

    # Cout tile: fill the 256-wide MXU on v6e/v7x when possible, 128 otherwise,
    # and for small Cout pad only to a multiple of 8 (no write amplification).
    if Cout >= 256 and Cout % 256 == 0:
        tn = 256
    elif Cout >= 128:
        tn = 128
    else:
        tn = _round_up(Cout, 8)
    Cout_p = _round_up(Cout, tn)
    co_tiles = Cout_p // tn
    K = kh * kw * Cin

    ph, pw = kh // 2, kw // 2
    Hp, Wp = H + 2 * ph, W + 2 * pw

    # --- glue: NCHW -> NHWC, bf16 cast, 'same' zero pad (one fused XLA pass) ---
    # TODO(synk): callers that already hold NHWC/bf16 activations can skip this.
    x = jnp.pad(jnp.transpose(x_nchw, (0, 2, 3, 1)).astype(jnp.bfloat16),
                ((0, 0), (ph, ph), (pw, pw), (0, 0)))

    # weight OIHW -> (Cout, kw, kh, Cin) -> (Cout_p, K): column order matches the
    # kernel's patch build (j outer, i inner, c fastest).
    w = jnp.transpose(params["conv_w"], (0, 3, 2, 1)).reshape(Cout, K)
    w = jnp.pad(w, ((0, Cout_p - Cout), (0, 0))).astype(jnp.bfloat16)

    # fold conv bias + eval-mode BN running stats into an affine (scale, bias)
    inv_std = lax.rsqrt(params["bn_var"].astype(jnp.float32) + eps)
    scale_v = params["bn_gamma"].astype(jnp.float32) * inv_std
    bias_v = ((params["conv_b"].astype(jnp.float32)
               - params["bn_mean"].astype(jnp.float32)) * scale_v
              + params["bn_beta"].astype(jnp.float32))
    scale = jnp.pad(scale_v, (0, Cout_p - Cout)).reshape(Cout_p, 1)
    bias = jnp.pad(bias_v, (0, Cout_p - Cout)).reshape(Cout_p, 1)

    # --- reuse-aware grid ordering: keep the bigger operand resident -----------
    x_img_bytes = Hp * Wp * Cin * 2
    w_total_bytes = Cout_p * K * 2
    reads_x_resident = N * x_img_bytes + N * w_total_bytes        # (N, co) order
    reads_w_resident = N * co_tiles * x_img_bytes + w_total_bytes  # (co, N) order
    x_resident = reads_x_resident <= reads_w_resident

    if x_resident:
        grid = (N, co_tiles)
        x_map = lambda n, co: (n, 0, 0, 0)
        w_map = lambda n, co: (co, 0)
        s_map = lambda n, co: (co, 0)
        o_map = lambda n, co: (n, co, 0)
        # inner axis carries the patch-scratch dependence -> must not be split
        sem = ("parallel", "arbitrary")
        build_every_step = False
    else:
        grid = (co_tiles, N)
        x_map = lambda co, n: (n, 0, 0, 0)
        w_map = lambda co, n: (co, 0)
        s_map = lambda co, n: (co, 0)
        o_map = lambda co, n: (n, co, 0)
        sem = ("parallel", "parallel")
        build_every_step = True

    kernel = functools.partial(_conv_bn_relu_kernel, kh=kh, kw=kw, H=H, W=W,
                               build_every_step=build_every_step)

    flops = 2 * N * H * W * K * Cout_p
    bytes_accessed = (x.size * 2 + w.size * 2 + (scale.size + bias.size) * 4
                      + N * Cout_p * H * W * jnp.dtype(out_dtype).itemsize)

    out = pl.pallas_call(
        kernel,
        out_shape=jax.ShapeDtypeStruct((N, Cout_p, H * W), out_dtype),
        grid_spec=pltpu.PrefetchScalarGridSpec(
            num_scalar_prefetch=0,
            grid=grid,
            in_specs=[
                pl.BlockSpec((1, Hp, Wp, Cin), x_map),
                pl.BlockSpec((tn, K), w_map),
                pl.BlockSpec((tn, 1), s_map),
                pl.BlockSpec((tn, 1), s_map),
            ],
            out_specs=pl.BlockSpec((1, tn, H * W), o_map),
            scratch_shapes=[pltpu.VMEM((K, H * W), jnp.bfloat16)],
        ),
        compiler_params=pltpu.CompilerParams(dimension_semantics=sem),
        cost_estimate=pl.CostEstimate(flops=flops, transcendentals=0,
                                      bytes_accessed=bytes_accessed),
    )(x, w, scale, bias)

    # --- glue: drop the (small) channel pad; NCHW is a free reshape ----------
    return out[:, :Cout, :].reshape(N, Cout, H, W)


# ----------------------------------------------------------------------------
# Pure-JAX reference (bf16-quantized conv inputs to match the kernel's cast)
# ----------------------------------------------------------------------------
def conv_bn_relu_ref(x_nchw, params, *, kernel_size, eps=1e-5):
    kh = kw = kernel_size
    xq = x_nchw.astype(jnp.bfloat16).astype(jnp.float32)
    wq = params["conv_w"].astype(jnp.bfloat16).astype(jnp.float32)
    y = lax.conv_general_dilated(
        xq, wq,
        window_strides=(1, 1),
        padding=((kh // 2, kh // 2), (kw // 2, kw // 2)),
        dimension_numbers=("NCHW", "OIHW", "NCHW"),
    ) + params["conv_b"].reshape(1, -1, 1, 1)
    inv_std = 1.0 / jnp.sqrt(params["bn_var"] + eps)
    y = (y - params["bn_mean"].reshape(1, -1, 1, 1)) * \
        (params["bn_gamma"] * inv_std).reshape(1, -1, 1, 1) + \
        params["bn_beta"].reshape(1, -1, 1, 1)
    return jnp.maximum(y, 0.0)


def _make_params(key, Cin, Cout, ksize):
    kw_, kb, kg, kbeta, km, kv = jax.random.split(key, 6)
    return {
        "conv_w": jax.random.normal(kw_, (Cout, Cin, ksize, ksize), jnp.float32) * 0.1,
        "conv_b": jax.random.normal(kb, (Cout,), jnp.float32) * 0.1,
        "bn_gamma": 1.0 + 0.1 * jax.random.normal(kg, (Cout,), jnp.float32),
        "bn_beta": 0.1 * jax.random.normal(kbeta, (Cout,), jnp.float32),
        "bn_mean": 0.1 * jax.random.normal(km, (Cout,), jnp.float32),
        "bn_var": jnp.abs(1.0 + 0.1 * jax.random.normal(kv, (Cout,), jnp.float32)),
    }


if __name__ == "__main__":
    key = jax.random.PRNGKey(0)

    # (N, Cin, H, W, Cout, k): config 1 matches the module's small-shape spec and
    # exercises the weight-resident grid order; config 2 exercises multi-Cout-tile
    # + patch reuse across Cout tiles (x-resident order) + channel padding.
    configs = [
        (2, 4, 16, 16, 8, 3),
        (1, 8, 8, 8, 160, 3),
    ]

    for idx, (N, Cin, H, W, Cout, ksize) in enumerate(configs):
        kx, kp, key = jax.random.split(key, 3)
        x = jax.random.normal(kx, (N, Cin, H, W), dtype=jnp.float32)
        params = _make_params(kp, Cin, Cout, ksize)

        fn = jax.jit(functools.partial(conv_bn_relu, kernel_size=ksize))
        out = fn(x, params)
        jax.block_until_ready(out)

        ref = conv_bn_relu_ref(x, params, kernel_size=ksize)
        np.testing.assert_allclose(np.asarray(out, dtype=np.float32),
                                   np.asarray(ref, dtype=np.float32),
                                   rtol=2e-2, atol=2e-2)

    print("KERNEL_OK")
</pallas_src>

<mosaic_0001>
module attributes {stable_mosaic.version = 11 : i64} {
  func.func @_conv_bn_relu_kernel(%arg0: i32, %arg1: i32, %arg2: memref<1x18x18x4xbf16, #tpu.memory_space<vmem>>, %arg3: memref<8x36xbf16, #tpu.memory_space<vmem>>, %arg4: memref<8x1xf32, #tpu.memory_space<vmem>>, %arg5: memref<8x1xf32, #tpu.memory_space<vmem>>, %arg6: memref<1x8x256xbf16, #tpu.memory_space<vmem>>, %arg7: memref<36x256xbf16, #tpu.memory_space<vmem>>) attributes {dimension_semantics = [#tpu.dimension_semantics<parallel>, #tpu.dimension_semantics<parallel>], iteration_bounds = array<i64: 1, 2>, scalar_prefetch = 0 : i64, scratch_operands = 1 : i64, tpu.core_type = #tpu.core_type<tc>, window_params = [{transform_indices = @transform_0, window_bounds = array<i64: 1, 18, 18, 4>}, {transform_indices = @transform_1, window_bounds = array<i64: 8, 36>}, {transform_indices = @transform_2, window_bounds = array<i64: 8, 1>}, {transform_indices = @transform_3, window_bounds = array<i64: 8, 1>}, {transform_indices = @transform_4, window_bounds = array<i64: 1, 8, 256>}]} {
    %c0 = arith.constant 0 : index
    %c0_0 = arith.constant 0 : index
    %c0_1 = arith.constant 0 : index
    %c0_2 = arith.constant 0 : index
    %0 = vector.load %arg2[%c0, %c0_0, %c0_1, %c0_2] : memref<1x18x18x4xbf16, #tpu.memory_space<vmem>>, vector<1x18x18x4xbf16>
    %1 = vector.shape_cast %0 : vector<1x18x18x4xbf16> to vector<18x18x4xbf16>
    %2 = vector.extract_strided_slice %1 {offsets = [0, 0, 0], sizes = [18, 16, 4], strides = [1, 1, 1]} : vector<18x18x4xbf16> to vector<18x16x4xbf16>
    %3 = vector.extract_strided_slice %2 {offsets = [0, 0, 0], sizes = [16, 16, 4], strides = [1, 1, 1]} : vector<18x16x4xbf16> to vector<16x16x4xbf16>
    %4 = vector.shape_cast %3 : vector<16x16x4xbf16> to vector<256x4xbf16>
    %5 = vector.extract_strided_slice %2 {offsets = [1, 0, 0], sizes = [16, 16, 4], strides = [1, 1, 1]} : vector<18x16x4xbf16> to vector<16x16x4xbf16>
    %6 = vector.shape_cast %5 : vector<16x16x4xbf16> to vector<256x4xbf16>
    %7 = vector.extract_strided_slice %2 {offsets = [2, 0, 0], sizes = [16, 16, 4], strides = [1, 1, 1]} : vector<18x16x4xbf16> to vector<16x16x4xbf16>
    %8 = vector.shape_cast %7 : vector<16x16x4xbf16> to vector<256x4xbf16>
    %9 = vector.extract_strided_slice %1 {offsets = [0, 1, 0], sizes = [18, 16, 4], strides = [1, 1, 1]} : vector<18x18x4xbf16> to vector<18x16x4xbf16>
    %10 = vector.extract_strided_slice %9 {offsets = [0, 0, 0], sizes = [16, 16, 4], strides = [1, 1, 1]} : vector<18x16x4xbf16> to vector<16x16x4xbf16>
    %11 = vector.shape_cast %10 : vector<16x16x4xbf16> to vector<256x4xbf16>
    %12 = vector.extract_strided_slice %9 {offsets = [1, 0, 0], sizes = [16, 16, 4], strides = [1, 1, 1]} : vector<18x16x4xbf16> to vector<16x16x4xbf16>
    %13 = vector.shape_cast %12 : vector<16x16x4xbf16> to vector<256x4xbf16>
    %14 = vector.extract_strided_slice %9 {offsets = [2, 0, 0], sizes = [16, 16, 4], strides = [1, 1, 1]} : vector<18x16x4xbf16> to vector<16x16x4xbf16>
    %15 = vector.shape_cast %14 : vector<16x16x4xbf16> to vector<256x4xbf16>
    %16 = vector.extract_strided_slice %1 {offsets = [0, 2, 0], sizes = [18, 16, 4], strides = [1, 1, 1]} : vector<18x18x4xbf16> to vector<18x16x4xbf16>
    %17 = vector.extract_strided_slice %16 {offsets = [0, 0, 0], sizes = [16, 16, 4], strides = [1, 1, 1]} : vector<18x16x4xbf16> to vector<16x16x4xbf16>
    %18 = vector.shape_cast %17 : vector<16x16x4xbf16> to vector<256x4xbf16>
    %19 = vector.extract_strided_slice %16 {offsets = [1, 0, 0], sizes = [16, 16, 4], strides = [1, 1, 1]} : vector<18x16x4xbf16> to vector<16x16x4xbf16>
    %20 = vector.shape_cast %19 : vector<16x16x4xbf16> to vector<256x4xbf16>
    %21 = vector.extract_strided_slice %16 {offsets = [2, 0, 0], sizes = [16, 16, 4], strides = [1, 1, 1]} : vector<18x16x4xbf16> to vector<16x16x4xbf16>
    %22 = vector.shape_cast %21 : vector<16x16x4xbf16> to vector<256x4xbf16>
    %23 = tpu.concatenate %4, %6, %8, %11, %13, %15, %18, %20, %22 in 1 : vector<256x4xbf16>, vector<256x4xbf16>, vector<256x4xbf16>, vector<256x4xbf16>, vector<256x4xbf16>, vector<256x4xbf16>, vector<256x4xbf16>, vector<256x4xbf16>, vector<256x4xbf16> -> vector<256x36xbf16>
    %24 = tpu.transpose %23, [1, 0] : vector<256x36xbf16> -> vector<36x256xbf16>
    %c0_3 = arith.constant 0 : index
    %c0_4 = arith.constant 0 : index
    %25 = vector.load %arg7[%c0_3, %c0_4] : memref<36x256xbf16, #tpu.memory_space<vmem>>, vector<36x256xbf16>
    tpu.vector_store %arg7[%c0_3, %c0_4], %24 {strides = array<i32>} : memref<36x256xbf16, #tpu.memory_space<vmem>>, vector<36x256xbf16>,
    %c0_5 = arith.constant 0 : index
    %c0_6 = arith.constant 0 : index
    %26 = vector.load %arg3[%c0_5, %c0_6] : memref<8x36xbf16, #tpu.memory_space<vmem>>, vector<8x36xbf16>
    %c0_7 = arith.constant 0 : index
    %c0_8 = arith.constant 0 : index
    %27 = vector.load %arg7[%c0_7, %c0_8] : memref<36x256xbf16, #tpu.memory_space<vmem>>, vector<36x256xbf16>
    %cst = arith.constant dense<0.000000e+00> : vector<8x256xf32>
    %28 = tpu.matmul %26, %27, %cst {dimension_numbers = #tpu.dot_dimension_numbers<[1], [0], [0], [1], [0, 0, 1, 1], [], []>} : vector<8x36xbf16>, vector<36x256xbf16>, vector<8x256xf32> -> vector<8x256xf32>
    %c0_9 = arith.constant 0 : index
    %c0_10 = arith.constant 0 : index
    %29 = vector.load %arg4[%c0_9, %c0_10] : memref<8x1xf32, #tpu.memory_space<vmem>>, vector<8x1xf32>
    %30 = vector.broadcast %29 : vector<8x1xf32> to vector<8x256xf32>
    %31 = arith.mulf %28, %30 : vector<8x256xf32>
    %c0_11 = arith.constant 0 : index
    %c0_12 = arith.constant 0 : index
    %32 = vector.load %arg5[%c0_11, %c0_12] : memref<8x1xf32, #tpu.memory_space<vmem>>, vector<8x1xf32>
    %33 = vector.broadcast %32 : vector<8x1xf32> to vector<8x256xf32>
    %34 = arith.addf %31, %33 : vector<8x256xf32>
    %cst_13 = arith.constant 0.000000e+00 : f32
    %35 = vector.broadcast %cst_13 : f32 to vector<8x256xf32>
    %36 = arith.maximumf %34, %35 : vector<8x256xf32>
    %37 = arith.truncf %36 : vector<8x256xf32> to vector<8x256xbf16>
    %c0_14 = arith.constant 0 : index
    %c0_15 = arith.constant 0 : index
    %c0_16 = arith.constant 0 : index
    %38 = vector.load %arg6[%c0_14, %c0_15, %c0_16] : memref<1x8x256xbf16, #tpu.memory_space<vmem>>, vector<1x8x256xbf16>
    %39 = vector.shape_cast %38 : vector<1x8x256xbf16> to vector<8x256xbf16>
    %40 = vector.shape_cast %37 : vector<8x256xbf16> to vector<1x8x256xbf16>
    tpu.vector_store %arg6[%c0_14, %c0_15, %c0_16], %40 {strides = array<i32>} : memref<1x8x256xbf16, #tpu.memory_space<vmem>>, vector<1x8x256xbf16>,
    return
  }
  func.func @transform_0(%arg0: i32, %arg1: i32) -> (i32, i32, i32, i32) {
    %c0_i32 = arith.constant 0 : i32
    %c0_i32_0 = arith.constant 0 : i32
    %c0_i32_1 = arith.constant 0 : i32
    %c0_i32_2 = arith.constant 0 : i32
    return %arg1, %c0_i32, %c0_i32_0, %c0_i32_1 : i32, i32, i32, i32
  }
  func.func @transform_1(%arg0: i32, %arg1: i32) -> (i32, i32) {
    %c0_i32 = arith.constant 0 : i32
    %c0_i32_0 = arith.constant 0 : i32
    return %arg0, %c0_i32 : i32, i32
  }
  func.func @transform_2(%arg0: i32, %arg1: i32) -> (i32, i32) {
    %c0_i32 = arith.constant 0 : i32
    %c0_i32_0 = arith.constant 0 : i32
    return %arg0, %c0_i32 : i32, i32
  }
  func.func @transform_3(%arg0: i32, %arg1: i32) -> (i32, i32) {
    %c0_i32 = arith.constant 0 : i32
    %c0_i32_0 = arith.constant 0 : i32
    return %arg0, %c0_i32 : i32, i32
  }
  func.func @transform_4(%arg0: i32, %arg1: i32) -> (i32, i32, i32) {
    %c0_i32 = arith.constant 0 : i32
    %c0_i32_0 = arith.constant 0 : i32
    return %arg1, %arg0, %c0_i32 : i32, i32, i32
  }
}

</mosaic_0001>

<llo_original>
// kernel: conv_bn_relu.1
$region0: #{conv_bn_relu.1}
  #allocation0 [shape = 'u32[]', space=smem, size = 0x4, offset = 0x4, fixed_abs, tag = 'smem constant byte address 0x4 - core index']
  #allocation1 [shape = 'u32[144,128]{1,0:T(1,128)}', space=vmem, size = 0x12000, scoped, tag = 'internal scratch']
  #allocation2 [shape = 'bf16[36,256]{1,0:T(8,128)(2,1)}', space=vmem, size = 0x5000, scoped, tag = 'scratch operand']
  %s0 = inlined_call_operand.vmem [shape: bf16[2,18,18,4], index: 0, kind: input, shape index: {}]
  %s1 = inlined_call_operand.vmem [shape: bf16[8,36], index: 1, kind: input, shape index: {}]
  %s2 = inlined_call_operand.vmem [shape: f32[8,1], index: 2, kind: input, shape index: {}]
  %s3 = inlined_call_operand.vmem [shape: f32[8,1], index: 3, kind: input, shape index: {}]
  %s4 = inlined_call_operand.vmem [shape: bf16[2,8,256], index: 4, kind: output, shape index: {}]
  %s5 = sld [smem:[#allocation0]]
  $region49: #{conv_bn_relu.1} parent=0
    _
  %s7 = ssub.s32 1, %s5
  %s8 = scalar_select 0, %s7, %s5
  loop: start=0, step=1, limit=4
  $region2: #{conv_bn_relu.1} parent=0 // loop_pre_header
    _
  $region3: #{conv_bn_relu.1} parent=0 // loop_header
    %s10 = sphi 0, %s14
    %p11 = scmp.ge.s32.totalorder %s10, 4
    %s17 = sphi 0, %s29
    %s18 = sphi 0, %s25
    %s19 = sphi 0, %s17
    %s20 = sphi 0, %s18
    %s21 = sphi 0, %s19
    %s22 = sphi 0, %s20
    %s32 = sphi 0, %s34
    %s35 = sphi 0, %s32
    %s36 = sphi 0, %s35
    %s52 = sphi 0, %s36
    %s58 = sphi 0, %s60
    %s61 = sphi 0, %s58
    %s62 = sphi 0, %s61
    %s78 = sphi 0, %s62
    %s84 = sphi 0, %s86
    %s87 = sphi 0, %s84
    %s88 = sphi 0, %s87
    %s104 = sphi 0, %s88
    %s110 = sphi 0, %s112
    %s113 = sphi 0, %s110
    %s114 = sphi 0, %s113
    %s130 = sphi 0, %s114
    %s138 = sphi 0, %s140
    %s141 = sphi 0, %s138
    %s142 = sphi 0, %s141
    %s158 = sphi 0, %s142
  $region4: #{conv_bn_relu.1} parent=0 // loop_header_branch
    %13 = sbr.rel (%p11) target = $region8
  $region5: #{conv_bn_relu.1} parent=0 // loop_body
    %s15 = ssub.s32 %s10, 1
    %s16 = ssub.s32 %s10, 2
    %s23 = sadd.s32 1, %s18
    %p24 = scmp.ge.s32.totalorder %s23, 2
    %s25 = scalar_select %p24, 0, %s23
    %s26 = sadd.s32 1, %s17
    %s27 = scalar_select %p24, %s26, %s17
    %p28 = scmp.ge.s32.totalorder %s27, 1
    %s29 = scalar_select %p28, 0, %s27
    %s30 = ssub.s32 %s18, %s25
    %p31 = scmp.eq.s32.totalorder %s30, 0
    %s33 = sadd.s32 %s32, 1
    %s34 = scalar_select %p31, %s32, %s33
    %p37 = pneg %p31
    %p38 = scmp.eq.s32.totalorder %s10, 1
    %p39 = por %p37, %p38
    %p40 = scmp.ne.s32.totalorder %s32, %s35
    %p41 = scmp.eq.s32.totalorder %s10, 0
    %p42 = por %p40, %p41
    %p43 = scmp.ne.s32.totalorder %s32, %s35
    %p44 = scmp.eq.s32.totalorder %s15, 1
    %p45 = por %p43, %p44
    %p46 = scmp.ne.s32.totalorder %s35, %s36
    %p47 = scmp.eq.s32.totalorder %s15, 0
    %p48 = por %p46, %p47
    %p49 = scmp.ne.s32.totalorder %s35, %s36
    %p50 = scmp.eq.s32.totalorder %s16, 1
    %p51 = por %p49, %p50
    %p53 = scmp.ne.s32.totalorder %s36, %s52
    %p54 = scmp.eq.s32.totalorder %s16, 0
    %p55 = por %p53, %p54
    %s56 = ssub.s32 %s17, %s29
    %p57 = scmp.eq.s32.totalorder %s56, 0
    %s59 = sadd.s32 %s58, 1
    %s60 = scalar_select %p57, %s58, %s59
    %p63 = pneg %p57
    %p64 = scmp.eq.s32.totalorder %s10, 1
    %p65 = por %p63, %p64
    %p66 = scmp.ne.s32.totalorder %s58, %s61
    %p67 = scmp.eq.s32.totalorder %s10, 0
    %p68 = por %p66, %p67
    %p69 = scmp.ne.s32.totalorder %s58, %s61
    %p70 = scmp.eq.s32.totalorder %s15, 1
    %p71 = por %p69, %p70
    %p72 = scmp.ne.s32.totalorder %s61, %s62
    %p73 = scmp.eq.s32.totalorder %s15, 0
    %p74 = por %p72, %p73
    %p75 = scmp.ne.s32.totalorder %s61, %s62
    %p76 = scmp.eq.s32.totalorder %s16, 1
    %p77 = por %p75, %p76
    %p79 = scmp.ne.s32.totalorder %s62, %s78
    %p80 = scmp.eq.s32.totalorder %s16, 0
    %p81 = por %p79, %p80
    %s82 = ssub.s32 %s17, %s29
    %p83 = scmp.eq.s32.totalorder %s82, 0
    %s85 = sadd.s32 %s84, 1
    %s86 = scalar_select %p83, %s84, %s85
    %p89 = pneg %p83
    %p90 = scmp.eq.s32.totalorder %s10, 1
    %p91 = por %p89, %p90
    %p92 = scmp.ne.s32.totalorder %s84, %s87
    %p93 = scmp.eq.s32.totalorder %s10, 0
    %p94 = por %p92, %p93
    %p95 = scmp.ne.s32.totalorder %s84, %s87
    %p96 = scmp.eq.s32.totalorder %s15, 1
    %p97 = por %p95, %p96
    %p98 = scmp.ne.s32.totalorder %s87, %s88
    %p99 = scmp.eq.s32.totalorder %s15, 0
    %p100 = por %p98, %p99
    %p101 = scmp.ne.s32.totalorder %s87, %s88
    %p102 = scmp.eq.s32.totalorder %s16, 1
    %p103 = por %p101, %p102
    %p105 = scmp.ne.s32.totalorder %s88, %s104
    %p106 = scmp.eq.s32.totalorder %s16, 0
    %p107 = por %p105, %p106
    %s108 = ssub.s32 %s17, %s29
    %p109 = scmp.eq.s32.totalorder %s108, 0
    %s111 = sadd.s32 %s110, 1
    %s112 = scalar_select %p109, %s110, %s111
    %p115 = pneg %p109
    %p116 = scmp.eq.s32.totalorder %s10, 1
    %p117 = por %p115, %p116
    %p118 = scmp.ne.s32.totalorder %s110, %s113
    %p119 = scmp.eq.s32.totalorder %s10, 0
    %p120 = por %p118, %p119
    %p121 = scmp.ne.s32.totalorder %s110, %s113
    %p122 = scmp.eq.s32.totalorder %s15, 1
    %p123 = por %p121, %p122
    %p124 = scmp.ne.s32.totalorder %s113, %s114
    %p125 = scmp.eq.s32.totalorder %s15, 0
    %p126 = por %p124, %p125
    %p127 = scmp.ne.s32.totalorder %s113, %s114
    %p128 = scmp.eq.s32.totalorder %s16, 1
    %p129 = por %p127, %p128
    %p131 = scmp.ne.s32.totalorder %s114, %s130
    %p132 = scmp.eq.s32.totalorder %s16, 0
    %p133 = por %p131, %p132
    %s134 = ssub.s32 %s18, %s25
    %s135 = ssub.s32 %s17, %s29
    %s136 = sor.u32 %s134, %s135
    %p137 = scmp.eq.s32.totalorder %s136, 0
    %s139 = sadd.s32 %s138, 1
    %s140 = scalar_select %p137, %s138, %s139
    %p143 = pneg %p137
    %p144 = scmp.eq.s32.totalorder %s10, 1
    %p145 = por %p143, %p144
    %p146 = scmp.ne.s32.totalorder %s138, %s141
    %p147 = scmp.eq.s32.totalorder %s10, 0
    %p148 = por %p146, %p147
    %p149 = scmp.ne.s32.totalorder %s138, %s141
    %p150 = scmp.eq.s32.totalorder %s15, 1
    %p151 = por %p149, %p150
    %p152 = scmp.ne.s32.totalorder %s141, %s142
    %p153 = scmp.eq.s32.totalorder %s15, 0
    %p154 = por %p152, %p153
    %p155 = scmp.ne.s32.totalorder %s141, %s142
    %p156 = scmp.eq.s32.totalorder %s16, 1
    %p157 = por %p155, %p156
    %p159 = scmp.ne.s32.totalorder %s142, %s158
    %p160 = scmp.eq.s32.totalorder %s16, 0
    %p161 = por %p159, %p160
    %p162 = scmp.le.s32.totalorder 1, %s10
    %p163 = scmp.lt.s32.totalorder %s10, 3
    %p164 = pnand %p162, %p163
    %p165 = pneg %p164
    // Predicated region
    $region9: #{conv_bn_relu.1} parent=5 // pred_check
      _
    $region10: #{conv_bn_relu.1} parent=5 // pred_check_branch
      %167 = sbr.rel (%p164) target = $region12
    $region11: #{conv_bn_relu.1} parent=5 // pred_region
      %s168 = ssub.s32 %s10, 1
      // Predicated region
      $region13: #{conv_bn_relu.1} parent=11 // pred_check
        %p169 = pneg %p74
      $region14: #{conv_bn_relu.1} parent=11 // pred_check_branch
        %171 = sbr.rel (%p169) target = $region16
      $region15: #{conv_bn_relu.1} parent=11 // pred_region
        %p172 = scmp.lt.s32.totalorder %s19, 0
        %s173 = scalar_select %p172, %s19, 0
        %s174 = smul.addr %s173, 4
        %s175 = scalar_lea.vmem %s1, %s174
      $region16: #{conv_bn_relu.1} parent=11 // pred_fallthru
        _
      // Predicated region
      $region17: #{conv_bn_relu.1} parent=11 // pred_check
        %p176 = pneg %p100
      $region18: #{conv_bn_relu.1} parent=11 // pred_check_branch
        %178 = sbr.rel (%p176) target = $region20
      $region19: #{conv_bn_relu.1} parent=11 // pred_region
        %p179 = scmp.lt.s32.totalorder %s19, 0
        %s180 = scalar_select %p179, %s19, 0
        %s181 = smul.addr %s180, 8
        %s182 = scalar_lea.vmem %s2, %s181
      $region20: #{conv_bn_relu.1} parent=11 // pred_fallthru
        _
      // Predicated region
      $region21: #{conv_bn_relu.1} parent=11 // pred_check
        %p183 = pneg %p126
      $region22: #{conv_bn_relu.1} parent=11 // pred_check_branch
        %185 = sbr.rel (%p183) target = $region24
      $region23: #{conv_bn_relu.1} parent=11 // pred_region
        %p186 = scmp.lt.s32.totalorder %s19, 0
        %s187 = scalar_select %p186, %s19, 0
        %s188 = smul.addr %s187, 8
        %s189 = scalar_lea.vmem %s3, %s188
      $region24: #{conv_bn_relu.1} parent=11 // pred_fallthru
        _
    $region12: #{conv_bn_relu.1} parent=5 // pred_fallthru
      _
    %p190 = scmp.lt.s32.totalorder %s10, 2
    // Predicated region
    $region25: #{conv_bn_relu.1} parent=5 // pred_check
      %p191 = pneg %p190
    $region26: #{conv_bn_relu.1} parent=5 // pred_check_branch
      %193 = sbr.rel (%p191) target = $region28
    $region27: #{conv_bn_relu.1} parent=5 // pred_region
      // Predicated region
      $region29: #{conv_bn_relu.1} parent=27 // pred_check
        %p194 = pneg %p42
      $region30: #{conv_bn_relu.1} parent=27 // pred_check_branch
        %196 = sbr.rel (%p194) target = $region32
      $region31: #{conv_bn_relu.1} parent=27 // pred_region
        %p197 = scmp.lt.s32.totalorder %s18, 1
        %s198 = scalar_select %p197, %s18, 1
        %s199 = smul.addr %s198, 54
        %s200 = smul.addr %s199, 4
        %s201 = scalar_lea.vmem %s0, %s200
      $region32: #{conv_bn_relu.1} parent=27 // pred_fallthru
        _
    $region28: #{conv_bn_relu.1} parent=5 // pred_fallthru
      _
    %p202 = scmp.le.s32.totalorder 1, %s10
    %p203 = scmp.lt.s32.totalorder %s10, 3
    %p204 = pnand %p202, %p203
    %p205 = pneg %p204
    // Predicated region
    $region33: #{conv_bn_relu.1} parent=5 // pred_check
      _
    $region34: #{conv_bn_relu.1} parent=5 // pred_check_branch
      %207 = sbr.rel (%p204) target = $region36
    $region35: #{conv_bn_relu.1} parent=5 // pred_region
      %s208 = ssub.s32 %s10, 1
      %p209 = scmp.lt.s32.totalorder %s20, 1
      %s210 = scalar_select %p209, %s20, 1
      %s211 = smul.addr %s210, 54
      %s212 = smul.addr %s211, 4
      %s213 = scalar_lea.vmem %s0, %s212
      %p214 = pneg %p48
      %p215 = pneg %p45
      %p216 = scmp.lt.s32.totalorder %s19, 0
      %s217 = scalar_select %p216, %s19, 0
      %s218 = smul.addr %s217, 4
      %s219 = scalar_lea.vmem %s1, %s218
      %p220 = pneg %p74
      %p221 = pneg %p71
      %p222 = scmp.lt.s32.totalorder %s19, 0
      %s223 = scalar_select %p222, %s19, 0
      %s224 = smul.addr %s223, 8
      %s225 = scalar_lea.vmem %s2, %s224
      %p226 = pneg %p100
      %p227 = pneg %p97
      %p228 = scmp.lt.s32.totalorder %s19, 0
      %s229 = scalar_select %p228, %s19, 0
      %s230 = smul.addr %s229, 8
      %s231 = scalar_lea.vmem %s3, %s230
      %p232 = pneg %p126
      %p233 = pneg %p123
      %p234 = pneg %p154
      %p235 = pneg %p151
      %p236 = scmp.lt.s32.totalorder %s20, 1
      %s237 = scalar_select %p236, %s20, 1
      %p238 = scmp.lt.s32.totalorder %s19, 0
      %s239 = scalar_select %p238, %s19, 0
      %s240 = smul.addr %s239, 2
      %s241 = smul.addr %s237, 2
      %s242 = sadd.s32 %s240, %s241
      %s243 = smul.addr %s242, 4
      %s244 = scalar_lea.vmem %s4, %s243
      %p245 = scmp.lt.s32.totalorder %s20, 1
      %s246 = scalar_select %p245, %s20, 1
      %s247 = smul.addr %s246, 54
      %s248 = smul.addr %s247, 4
      %s249 = scalar_lea.vmem %s0, %s248
      %p250 = scmp.lt.s32.totalorder %s19, 0
      %s251 = scalar_select %p250, %s19, 0
      %s252 = smul.addr %s251, 4
      %s253 = scalar_lea.vmem %s1, %s252
      %p254 = scmp.lt.s32.totalorder %s19, 0
      %s255 = scalar_select %p254, %s19, 0
      %s256 = smul.addr %s255, 8
      %s257 = scalar_lea.vmem %s2, %s256
      %p258 = scmp.lt.s32.totalorder %s19, 0
      %s259 = scalar_select %p258, %s19, 0
      %s260 = smul.addr %s259, 8
      %s261 = scalar_lea.vmem %s3, %s260
      %p262 = scmp.lt.s32.totalorder %s20, 1
      %s263 = scalar_select %p262, %s20, 1
      %p264 = scmp.lt.s32.totalorder %s19, 0
      %s265 = scalar_select %p264, %s19, 0
      %s266 = smul.addr %s265, 2
      %s267 = smul.addr %s263, 2
      %s268 = sadd.s32 %s266, %s267
      %s269 = smul.addr %s268, 4
      %s270 = scalar_lea.vmem %s4, %s269
      %v272 = vld [vmem:[%s249] sm:$0xf]
      %v273 = vld [vmem:[%s249 + $0x4] sm:$0xf]
      %v274 = vld [vmem:[%s249 + $0x8] sm:$0x1]
      %v275 = vld [vmem:[%s249 + $0xc] sm:$0xf]
      %v276 = vld [vmem:[%s249 + $0x10] sm:$0xf]
      %v277 = vld [vmem:[%s249 + $0x14] sm:$0x1]
      %v278 = vld [vmem:[%s249 + $0x18] sm:$0xf]
      %v279 = vld [vmem:[%s249 + $0x1c] sm:$0xf]
      %v280 = vld [vmem:[%s249 + $0x20] sm:$0x1]
      %v281 = vld [vmem:[%s249 + $0x24] sm:$0xf]
      %v282 = vld [vmem:[%s249 + $0x28] sm:$0xf]
      %v283 = vld [vmem:[%s249 + $0x2c] sm:$0x1]
      %v284 = vld [vmem:[%s249 + $0x30] sm:$0xf]
      %v285 = vld [vmem:[%s249 + $0x34] sm:$0xf]
      %v286 = vld [vmem:[%s249 + $0x38] sm:$0x1]
      %v287 = vld [vmem:[%s249 + $0x3c] sm:$0xf]
      %v288 = vld [vmem:[%s249 + $0x40] sm:$0xf]
      %v289 = vld [vmem:[%s249 + $0x44] sm:$0x1]
      %v290 = vld [vmem:[%s249 + $0x48] sm:$0xf]
      %v291 = vld [vmem:[%s249 + $0x4c] sm:$0xf]
      %v292 = vld [vmem:[%s249 + $0x50] sm:$0x1]
      %v293 = vld [vmem:[%s249 + $0x54] sm:$0xf]
      %v294 = vld [vmem:[%s249 + $0x58] sm:$0xf]
      %v295 = vld [vmem:[%s249 + $0x5c] sm:$0x1]
      %v296 = vld [vmem:[%s249 + $0x60] sm:$0xf]
      %v297 = vld [vmem:[%s249 + $0x64] sm:$0xf]
      %v298 = vld [vmem:[%s249 + $0x68] sm:$0x1]
      %v299 = vld [vmem:[%s249 + $0x6c] sm:$0xf]
      %v300 = vld [vmem:[%s249 + $0x70] sm:$0xf]
      %v301 = vld [vmem:[%s249 + $0x74] sm:$0x1]
      %v302 = vld [vmem:[%s249 + $0x78] sm:$0xf]
      %v303 = vld [vmem:[%s249 + $0x7c] sm:$0xf]
      %v304 = vld [vmem:[%s249 + $0x80] sm:$0x1]
      %v305 = vld [vmem:[%s249 + $0x84] sm:$0xf]
      %v306 = vld [vmem:[%s249 + $0x88] sm:$0xf]
      %v307 = vld [vmem:[%s249 + $0x8c] sm:$0x1]
      %v308 = vld [vmem:[%s249 + $0x90] sm:$0xf]
      %v309 = vld [vmem:[%s249 + $0x94] sm:$0xf]
      %v310 = vld [vmem:[%s249 + $0x98] sm:$0x1]
      %v311 = vld [vmem:[%s249 + $0x9c] sm:$0xf]
      %v312 = vld [vmem:[%s249 + $0xa0] sm:$0xf]
      %v313 = vld [vmem:[%s249 + $0xa4] sm:$0x1]
      %v314 = vld [vmem:[%s249 + $0xa8] sm:$0xf]
      %v315 = vld [vmem:[%s249 + $0xac] sm:$0xf]
      %v316 = vld [vmem:[%s249 + $0xb0] sm:$0x1]
      %v317 = vld [vmem:[%s249 + $0xb4] sm:$0xf]
      %v318 = vld [vmem:[%s249 + $0xb8] sm:$0xf]
      %v319 = vld [vmem:[%s249 + $0xbc] sm:$0x1]
      %v320 = vld [vmem:[%s249 + $0xc0] sm:$0xf]
      %v321 = vld [vmem:[%s249 + $0xc4] sm:$0xf]
      %v322 = vld [vmem:[%s249 + $0xc8] sm:$0x1]
      %v323 = vld [vmem:[%s249 + $0xcc] sm:$0xf]
      %v324 = vld [vmem:[%s249 + $0xd0] sm:$0xf]
      %v325 = vld [vmem:[%s249 + $0xd4] sm:$0x1]
      %vm326 = vsmask.f32 3328
      %vm327 = vsmask.f32 7440
      %vm328 = vmor %vm326, %vm327
      %v330 = vshrl.u32 %v272, 16
      %v332 = vrot.slane %v330, 4
      %v333 = vshll.u32 %v272, 16
      %v335 = vrot.slane %v333, 5
      %v336 = vor.u32 %v332, %v335
      %v337 = vrot.slane %v336, 4
      %v339 = vshll.u32 %v273, 16
      %v341 = vrot.slane %v339, 5
      %v342 = vsel %vm328, %v337, %v341
      %v343 = vshrl.u32 %v273, 16
      %v345 = vrot.slane %v343, 4
      %v346 = vor.u32 %v345, %v341
      %v347 = vrot.slane %v346, 4
      %v349 = vshll.u32 %v274, 16
      %v351 = vrot.slane %v349, 5
      %v352 = vsel %vm328, %v347, %v351
      %v354 = vshrl.u32 %v275, 16
      %v356 = vrot.slane %v354, 4
      %v357 = vshll.u32 %v275, 16
      %v359 = vrot.slane %v357, 5
      %v360 = vor.u32 %v356, %v359
      %v361 = vrot.slane %v360, 4
      %v363 = vshll.u32 %v276, 16
      %v365 = vrot.slane %v363, 5
      %v366 = vsel %vm328, %v361, %v365
      %v367 = vshrl.u32 %v276, 16
      %v369 = vrot.slane %v367, 4
      %v370 = vor.u32 %v369, %v365
      %v371 = vrot.slane %v370, 4
      %v373 = vshll.u32 %v277, 16
      %v375 = vrot.slane %v373, 5
      %v376 = vsel %vm328, %v371, %v375
      %v378 = vshrl.u32 %v278, 16
      %v380 = vrot.slane %v378, 4
      %v381 = vshll.u32 %v278, 16
      %v383 = vrot.slane %v381, 5
      %v384 = vor.u32 %v380, %v383
      %v385 = vrot.slane %v384, 4
      %v387 = vshll.u32 %v279, 16
      %v389 = vrot.slane %v387, 5
      %v390 = vsel %vm328, %v385, %v389
      %v391 = vshrl.u32 %v279, 16
      %v393 = vrot.slane %v391, 4
      %v394 = vor.u32 %v393, %v389
      %v395 = vrot.slane %v394, 4
      %v397 = vshll.u32 %v280, 16
      %v399 = vrot.slane %v397, 5
      %v400 = vsel %vm328, %v395, %v399
      %v402 = vshrl.u32 %v281, 16
      %v404 = vrot.slane %v402, 4
      %v405 = vshll.u32 %v281, 16
      %v407 = vrot.slane %v405, 5
      %v408 = vor.u32 %v404, %v407
      %v409 = vrot.slane %v408, 4
      %v411 = vshll.u32 %v282, 16
      %v413 = vrot.slane %v411, 5
      %v414 = vsel %vm328, %v409, %v413
      %v415 = vshrl.u32 %v282, 16
      %v417 = vrot.slane %v415, 4
      %v418 = vor.u32 %v417, %v413
      %v419 = vrot.slane %v418, 4
      %v421 = vshll.u32 %v283, 16
      %v423 = vrot.slane %v421, 5
      %v424 = vsel %vm328, %v419, %v423
      %v426 = vshrl.u32 %v284, 16
      %v428 = vrot.slane %v426, 4
      %v429 = vshll.u32 %v284, 16
      %v431 = vrot.slane %v429, 5
      %v432 = vor.u32 %v428, %v431
      %v433 = vrot.slane %v432, 4
      %v435 = vshll.u32 %v285, 16
      %v437 = vrot.slane %v435, 5
      %v438 = vsel %vm328, %v433, %v437
      %v439 = vshrl.u32 %v285, 16
      %v441 = vrot.slane %v439, 4
      %v442 = vor.u32 %v441, %v437
      %v443 = vrot.slane %v442, 4
      %v445 = vshll.u32 %v286, 16
      %v447 = vrot.slane %v445, 5
      %v448 = vsel %vm328, %v443, %v447
      %v450 = vshrl.u32 %v287, 16
      %v452 = vrot.slane %v450, 4
      %v453 = vshll.u32 %v287, 16
      %v455 = vrot.slane %v453, 5
      %v456 = vor.u32 %v452, %v455
      %v457 = vrot.slane %v456, 4
      %v459 = vshll.u32 %v288, 16
      %v461 = vrot.slane %v459, 5
      %v462 = vsel %vm328, %v457, %v461
      %v463 = vshrl.u32 %v288, 16
      %v465 = vrot.slane %v463, 4
      %v466 = vor.u32 %v465, %v461
      %v467 = vrot.slane %v466, 4
      %v469 = vshll.u32 %v289, 16
      %v471 = vrot.slane %v469, 5
      %v472 = vsel %vm328, %v467, %v471
      %v474 = vshrl.u32 %v290, 16
      %v476 = vrot.slane %v474, 4
      %v477 = vshll.u32 %v290, 16
      %v479 = vrot.slane %v477, 5
      %v480 = vor.u32 %v476, %v479
      %v481 = vrot.slane %v480, 4
      %v483 = vshll.u32 %v291, 16
      %v485 = vrot.slane %v483, 5
      %v486 = vsel %vm328, %v481, %v485
      %v487 = vshrl.u32 %v291, 16
      %v489 = vrot.slane %v487, 4
      %v490 = vor.u32 %v489, %v485
      %v491 = vrot.slane %v490, 4
      %v493 = vshll.u32 %v292, 16
      %v495 = vrot.slane %v493, 5
      %v496 = vsel %vm328, %v491, %v495
      %v498 = vshrl.u32 %v293, 16
      %v500 = vrot.slane %v498, 4
      %v501 = vshll.u32 %v293, 16
      %v503 = vrot.slane %v501, 5
      %v504 = vor.u32 %v500, %v503
      %v505 = vrot.slane %v504, 4
      %v507 = vshll.u32 %v294, 16
      %v509 = vrot.slane %v507, 5
      %v510 = vsel %vm328, %v505, %v509
      %v511 = vshrl.u32 %v294, 16
      %v513 = vrot.slane %v511, 4
      %v514 = vor.u32 %v513, %v509
      %v515 = vrot.slane %v514, 4
      %v517 = vshll.u32 %v295, 16
      %v519 = vrot.slane %v517, 5
      %v520 = vsel %vm328, %v515, %v519
      %v522 = vshrl.u32 %v296, 16
      %v524 = vrot.slane %v522, 4
      %v525 = vshll.u32 %v296, 16
      %v527 = vrot.slane %v525, 5
      %v528 = vor.u32 %v524, %v527
      %v529 = vrot.slane %v528, 4
      %v531 = vshll.u32 %v297, 16
      %v533 = vrot.slane %v531, 5
      %v534 = vsel %vm328, %v529, %v533
      %v535 = vshrl.u32 %v297, 16
      %v537 = vrot.slane %v535, 4
      %v538 = vor.u32 %v537, %v533
      %v539 = vrot.slane %v538, 4
      %v541 = vshll.u32 %v298, 16
      %v543 = vrot.slane %v541, 5
      %v544 = vsel %vm328, %v539, %v543
      %v546 = vshrl.u32 %v299, 16
      %v548 = vrot.slane %v546, 4
      %v549 = vshll.u32 %v299, 16
      %v551 = vrot.slane %v549, 5
      %v552 = vor.u32 %v548, %v551
      %v553 = vrot.slane %v552, 4
      %v555 = vshll.u32 %v300, 16
      %v557 = vrot.slane %v555, 5
      %v558 = vsel %vm328, %v553, %v557
      %v559 = vshrl.u32 %v300, 16
      %v561 = vrot.slane %v559, 4
      %v562 = vor.u32 %v561, %v557
      %v563 = vrot.slane %v562, 4
      %v565 = vshll.u32 %v301, 16
      %v567 = vrot.slane %v565, 5
      %v568 = vsel %vm328, %v563, %v567
      %v570 = vshrl.u32 %v302, 16
      %v572 = vrot.slane %v570, 4
      %v573 = vshll.u32 %v302, 16
      %v575 = vrot.slane %v573, 5
      %v576 = vor.u32 %v572, %v575
      %v577 = vrot.slane %v576, 4
      %v579 = vshll.u32 %v303, 16
      %v581 = vrot.slane %v579, 5
      %v582 = vsel %vm328, %v577, %v581
      %v583 = vshrl.u32 %v303, 16
      %v585 = vrot.slane %v583, 4
      %v586 = vor.u32 %v585, %v581
      %v587 = vrot.slane %v586, 4
      %v589 = vshll.u32 %v304, 16
      %v591 = vrot.slane %v589, 5
      %v592 = vsel %vm328, %v587, %v591
      %v594 = vshrl.u32 %v305, 16
      %v596 = vrot.slane %v594, 4
      %v597 = vshll.u32 %v305, 16
      %v599 = vrot.slane %v597, 5
      %v600 = vor.u32 %v596, %v599
      %v601 = vrot.slane %v600, 4
      %v603 = vshll.u32 %v306, 16
      %v605 = vrot.slane %v603, 5
      %v606 = vsel %vm328, %v601, %v605
      %v607 = vshrl.u32 %v306, 16
      %v609 = vrot.slane %v607, 4
      %v610 = vor.u32 %v609, %v605
      %v611 = vrot.slane %v610, 4
      %v613 = vshll.u32 %v307, 16
      %v615 = vrot.slane %v613, 5
      %v616 = vsel %vm328, %v611, %v615
      %v618 = vshrl.u32 %v308, 16
      %v620 = vrot.slane %v618, 4
      %v621 = vshll.u32 %v308, 16
      %v623 = vrot.slane %v621, 5
      %v624 = vor.u32 %v620, %v623
      %v625 = vrot.slane %v624, 4
      %v627 = vshll.u32 %v309, 16
      %v629 = vrot.slane %v627, 5
      %v630 = vsel %vm328, %v625, %v629
      %v631 = vshrl.u32 %v309, 16
      %v633 = vrot.slane %v631, 4
      %v634 = vor.u32 %v633, %v629
      %v635 = vrot.slane %v634, 4
      %v637 = vshll.u32 %v310, 16
      %v639 = vrot.slane %v637, 5
      %v640 = vsel %vm328, %v635, %v639
      %v642 = vshrl.u32 %v311, 16
      %v644 = vrot.slane %v642, 4
      %v645 = vshll.u32 %v311, 16
      %v647 = vrot.slane %v645, 5
      %v648 = vor.u32 %v644, %v647
      %v649 = vrot.slane %v648, 4
      %v651 = vshll.u32 %v312, 16
      %v653 = vrot.slane %v651, 5
      %v654 = vsel %vm328, %v649, %v653
      %v655 = vshrl.u32 %v312, 16
      %v657 = vrot.slane %v655, 4
      %v658 = vor.u32 %v657, %v653
      %v659 = vrot.slane %v658, 4
      %v661 = vshll.u32 %v313, 16
      %v663 = vrot.slane %v661, 5
      %v664 = vsel %vm328, %v659, %v663
      %v666 = vshrl.u32 %v314, 16
      %v668 = vrot.slane %v666, 4
      %v669 = vshll.u32 %v314, 16
      %v671 = vrot.slane %v669, 5
      %v672 = vor.u32 %v668, %v671
      %v673 = vrot.slane %v672, 4
      %v675 = vshll.u32 %v315, 16
      %v677 = vrot.slane %v675, 5
      %v678 = vsel %vm328, %v673, %v677
      %v679 = vshrl.u32 %v315, 16
      %v681 = vrot.slane %v679, 4
      %v682 = vor.u32 %v681, %v677
      %v683 = vrot.slane %v682, 4
      %v685 = vshll.u32 %v316, 16
      %v687 = vrot.slane %v685, 5
      %v688 = vsel %vm328, %v683, %v687
      %v690 = vshrl.u32 %v317, 16
      %v692 = vrot.slane %v690, 4
      %v693 = vshll.u32 %v317, 16
      %v695 = vrot.slane %v693, 5
      %v696 = vor.u32 %v692, %v695
      %v697 = vrot.slane %v696, 4
      %v699 = vshll.u32 %v318, 16
      %v701 = vrot.slane %v699, 5
      %v702 = vsel %vm328, %v697, %v701
      %v703 = vshrl.u32 %v318, 16
      %v705 = vrot.slane %v703, 4
      %v706 = vor.u32 %v705, %v701
      %v707 = vrot.slane %v706, 4
      %v709 = vshll.u32 %v319, 16
      %v711 = vrot.slane %v709, 5
      %v712 = vsel %vm328, %v707, %v711
      %v714 = vshrl.u32 %v320, 16
      %v716 = vrot.slane %v714, 4
      %v717 = vshll.u32 %v320, 16
      %v719 = vrot.slane %v717, 5
      %v720 = vor.u32 %v716, %v719
      %v721 = vrot.slane %v720, 4
      %v723 = vshll.u32 %v321, 16
      %v725 = vrot.slane %v723, 5
      %v726 = vsel %vm328, %v721, %v725
      %v727 = vshrl.u32 %v321, 16
      %v729 = vrot.slane %v727, 4
      %v730 = vor.u32 %v729, %v725
      %v731 = vrot.slane %v730, 4
      %v733 = vshll.u32 %v322, 16
      %v735 = vrot.slane %v733, 5
      %v736 = vsel %vm328, %v731, %v735
      %v738 = vshrl.u32 %v323, 16
      %v740 = vrot.slane %v738, 4
      %v741 = vshll.u32 %v323, 16
      %v743 = vrot.slane %v741, 5
      %v744 = vor.u32 %v740, %v743
      %v745 = vrot.slane %v744, 4
      %v747 = vshll.u32 %v324, 16
      %v749 = vrot.slane %v747, 5
      %v750 = vsel %vm328, %v745, %v749
      %v751 = vshrl.u32 %v324, 16
      %v753 = vrot.slane %v751, 4
      %v754 = vor.u32 %v753, %v749
      %v755 = vrot.slane %v754, 4
      %v757 = vshll.u32 %v325, 16
      %v759 = vrot.slane %v757, 5
      %v760 = vsel %vm328, %v755, %v759
      %vm809 = vcmask 1042432
      %vm810 = vcmask 1046532
      %vm811 = vmor %vm809, %vm810
      %v812 = vrot.slane %v272, 5
      %v813 = vrot.slane %v812, 4
      %v814 = vrot.slane %v273, 5
      %v815 = vsel %vm811, %v813, %v814
      %v816 = vrot.slane %v814, 4
      %v817 = vrot.slane %v274, 5
      %v818 = vsel %vm811, %v816, %v817
      %v819 = vrot.slane %v275, 5
      %v820 = vrot.slane %v819, 4
      %v821 = vrot.slane %v276, 5
      %v822 = vsel %vm811, %v820, %v821
      %v823 = vrot.slane %v821, 4
      %v824 = vrot.slane %v277, 5
      %v825 = vsel %vm811, %v823, %v824
      %v826 = vrot.slane %v278, 5
      %v827 = vrot.slane %v826, 4
      %v828 = vrot.slane %v279, 5
      %v829 = vsel %vm811, %v827, %v828
      %v830 = vrot.slane %v828, 4
      %v831 = vrot.slane %v280, 5
      %v832 = vsel %vm811, %v830, %v831
      %v833 = vrot.slane %v281, 5
      %v834 = vrot.slane %v833, 4
      %v835 = vrot.slane %v282, 5
      %v836 = vsel %vm811, %v834, %v835
      %v837 = vrot.slane %v835, 4
      %v838 = vrot.slane %v283, 5
      %v839 = vsel %vm811, %v837, %v838
      %v840 = vrot.slane %v284, 5
      %v841 = vrot.slane %v840, 4
      %v842 = vrot.slane %v285, 5
      %v843 = vsel %vm811, %v841, %v842
      %v844 = vrot.slane %v842, 4
      %v845 = vrot.slane %v286, 5
      %v846 = vsel %vm811, %v844, %v845
      %v847 = vrot.slane %v287, 5
      %v848 = vrot.slane %v847, 4
      %v849 = vrot.slane %v288, 5
      %v850 = vsel %vm811, %v848, %v849
      %v851 = vrot.slane %v849, 4
      %v852 = vrot.slane %v289, 5
      %v853 = vsel %vm811, %v851, %v852
      %v854 = vrot.slane %v290, 5
      %v855 = vrot.slane %v854, 4
      %v856 = vrot.slane %v291, 5
      %v857 = vsel %vm811, %v855, %v856
      %v858 = vrot.slane %v856, 4
      %v859 = vrot.slane %v292, 5
      %v860 = vsel %vm811, %v858, %v859
      %v861 = vrot.slane %v293, 5
      %v862 = vrot.slane %v861, 4
      %v863 = vrot.slane %v294, 5
      %v864 = vsel %vm811, %v862, %v863
      %v865 = vrot.slane %v863, 4
      %v866 = vrot.slane %v295, 5
      %v867 = vsel %vm811, %v865, %v866
      %v868 = vrot.slane %v296, 5
      %v869 = vrot.slane %v868, 4
      %v870 = vrot.slane %v297, 5
      %v871 = vsel %vm811, %v869, %v870
      %v872 = vrot.slane %v870, 4
      %v873 = vrot.slane %v298, 5
      %v874 = vsel %vm811, %v872, %v873
      %v875 = vrot.slane %v299, 5
      %v876 = vrot.slane %v875, 4
      %v877 = vrot.slane %v300, 5
      %v878 = vsel %vm811, %v876, %v877
      %v879 = vrot.slane %v877, 4
      %v880 = vrot.slane %v301, 5
      %v881 = vsel %vm811, %v879, %v880
      %v882 = vrot.slane %v302, 5
      %v883 = vrot.slane %v882, 4
      %v884 = vrot.slane %v303, 5
      %v885 = vsel %vm811, %v883, %v884
      %v886 = vrot.slane %v884, 4
      %v887 = vrot.slane %v304, 5
      %v888 = vsel %vm811, %v886, %v887
      %v889 = vrot.slane %v305, 5
      %v890 = vrot.slane %v889, 4
      %v891 = vrot.slane %v306, 5
      %v892 = vsel %vm811, %v890, %v891
      %v893 = vrot.slane %v891, 4
      %v894 = vrot.slane %v307, 5
      %v895 = vsel %vm811, %v893, %v894
      %v896 = vrot.slane %v308, 5
      %v897 = vrot.slane %v896, 4
      %v898 = vrot.slane %v309, 5
      %v899 = vsel %vm811, %v897, %v898
      %v900 = vrot.slane %v898, 4
      %v901 = vrot.slane %v310, 5
      %v902 = vsel %vm811, %v900, %v901
      %v903 = vrot.slane %v311, 5
      %v904 = vrot.slane %v903, 4
      %v905 = vrot.slane %v312, 5
      %v906 = vsel %vm811, %v904, %v905
      %v907 = vrot.slane %v905, 4
      %v908 = vrot.slane %v313, 5
      %v909 = vsel %vm811, %v907, %v908
      %v910 = vrot.slane %v314, 5
      %v911 = vrot.slane %v910, 4
      %v912 = vrot.slane %v315, 5
      %v913 = vsel %vm811, %v911, %v912
      %v914 = vrot.slane %v912, 4
      %v915 = vrot.slane %v316, 5
      %v916 = vsel %vm811, %v914, %v915
      %v917 = vrot.slane %v317, 5
      %v918 = vrot.slane %v917, 4
      %v919 = vrot.slane %v318, 5
      %v920 = vsel %vm811, %v918, %v919
      %v921 = vrot.slane %v919, 4
      %v922 = vrot.slane %v319, 5
      %v923 = vsel %vm811, %v921, %v922
      %v927 = vrot.slane %v320, 5
      %v928 = vrot.slane %v927, 4
      %v929 = vrot.slane %v321, 5
      %v930 = vsel %vm811, %v928, %v929
      %v931 = vrot.slane %v929, 4
      %v932 = vrot.slane %v322, 5
      %v933 = vsel %vm811, %v931, %v932
      %v937 = vrot.slane %v323, 5
      %v938 = vrot.slane %v937, 4
      %v939 = vrot.slane %v324, 5
      %v940 = vsel %vm811, %v938, %v939
      %v941 = vrot.slane %v939, 4
      %v942 = vrot.slane %v325, 5
      %v943 = vsel %vm811, %v941, %v942
      %v944 = vunpack.c.l.b16 %v272
      %v945 = vunpack.c.l.b16 %v273
      %v946 = vunpack.c.l.b16 %v275
      %v947 = vunpack.c.l.b16 %v276
      %v948 = vunpack.c.l.b16 %v278
      %v949 = vunpack.c.l.b16 %v279
      %v950 = vunpack.c.l.b16 %v281
      %v951 = vunpack.c.l.b16 %v282
      %v952 = vunpack.c.l.b16 %v284
      %v953 = vunpack.c.l.b16 %v285
      %v954 = vunpack.c.l.b16 %v287
      %v955 = vunpack.c.l.b16 %v288
      %v956 = vunpack.c.l.b16 %v290
      %v957 = vunpack.c.l.b16 %v291
      %v958 = vunpack.c.l.b16 %v293
      %v959 = vunpack.c.l.b16 %v294
      %v960 = vunpack.c.l.b16 %v296
      %v961 = vunpack.c.l.b16 %v297
      %v962 = vunpack.c.l.b16 %v299
      %v963 = vunpack.c.l.b16 %v300
      %v964 = vunpack.c.l.b16 %v302
      %v965 = vunpack.c.l.b16 %v303
      %v966 = vunpack.c.l.b16 %v305
      %v967 = vunpack.c.l.b16 %v306
      %v968 = vunpack.c.l.b16 %v308
      %v969 = vunpack.c.l.b16 %v309
      %v970 = vunpack.c.l.b16 %v311
      %v971 = vunpack.c.l.b16 %v312
      %v972 = vunpack.c.l.b16 %v314
      %v973 = vunpack.c.l.b16 %v315
      %v974 = vunpack.c.l.b16 %v317
      %v975 = vunpack.c.l.b16 %v318
      %v976 = vpack.c.b16 %v945, %v944
      %v977 = vpack.c.b16 %v947, %v946
      %v978 = vpack.c.b16 %v949, %v948
      %v979 = vpack.c.b16 %v951, %v950
      %v980 = vpack.c.b16 %v953, %v952
      %v981 = vpack.c.b16 %v955, %v954
      %v982 = vpack.c.b16 %v957, %v956
      %v983 = vpack.c.b16 %v959, %v958
      %v984 = vpack.c.b16 %v961, %v960
      %v985 = vpack.c.b16 %v963, %v962
      %v986 = vpack.c.b16 %v965, %v964
      %v987 = vpack.c.b16 %v967, %v966
      %v988 = vpack.c.b16 %v969, %v968
      %v989 = vpack.c.b16 %v971, %v970
      %v990 = vpack.c.b16 %v973, %v972
      %v991 = vpack.c.b16 %v975, %v974
      %v992 = vunpack.c.l.b16 %v320
      %v993 = vunpack.c.l.b16 %v321
      %v994 = vpack.c.b16 %v993, %v992
      %995 = vrot.lane.b32.xlu0 %v977, 4
      %v996 = vpop.permute.xlu0 %995
      %997 = vrot.lane.b32.xlu0 %v978, 4
      %v998 = vpop.permute.xlu0 %997
      %999 = vrot.lane.b32.xlu0 %v979, 4
      %v1000 = vpop.permute.xlu0 %999
      %1001 = vrot.lane.b32.xlu0 %v980, 4
      %v1002 = vpop.permute.xlu0 %1001
      %1003 = vrot.lane.b32.xlu0 %v981, 4
      %v1004 = vpop.permute.xlu0 %1003
      %1005 = vrot.lane.b32.xlu0 %v982, 4
      %v1006 = vpop.permute.xlu0 %1005
      %1007 = vrot.lane.b32.xlu0 %v983, 4
      %v1008 = vpop.permute.xlu0 %1007
      %1009 = vrot.lane.b32.xlu0 %v984, 4
      %v1010 = vpop.permute.xlu0 %1009
      %1011 = vrot.lane.b32.xlu0 %v985, 4
      %v1012 = vpop.permute.xlu0 %1011
      %1013 = vrot.lane.b32.xlu0 %v986, 4
      %v1014 = vpop.permute.xlu0 %1013
      %1015 = vrot.lane.b32.xlu0 %v987, 4
      %v1016 = vpop.permute.xlu0 %1015
      %1017 = vrot.lane.b32.xlu0 %v988, 4
      %v1018 = vpop.permute.xlu0 %1017
      %1019 = vrot.lane.b32.xlu0 %v989, 4
      %v1020 = vpop.permute.xlu0 %1019
      %1021 = vrot.lane.b32.xlu0 %v990, 4
      %v1022 = vpop.permute.xlu0 %1021
      %1023 = vrot.lane.b32.xlu0 %v991, 4
      %v1024 = vpop.permute.xlu0 %1023
      %1025 = vrot.lane.b32.xlu0 %v994, 4
      %v1026 = vpop.permute.xlu0 %1025
      %v1027 = vunpack.c.l.b16 %v323
      %v1028 = vunpack.c.l.b16 %v324
      %v1029 = vpack.c.b16 %v1028, %v1027
      %1030 = vrot.lane.b32.xlu0 %v978, 8
      %v1031 = vpop.permute.xlu0 %1030
      %1032 = vrot.lane.b32.xlu0 %v979, 8
      %v1033 = vpop.permute.xlu0 %1032
      %1034 = vrot.lane.b32.xlu0 %v980, 8
      %v1035 = vpop.permute.xlu0 %1034
      %1036 = vrot.lane.b32.xlu0 %v981, 8
      %v1037 = vpop.permute.xlu0 %1036
      %1038 = vrot.lane.b32.xlu0 %v982, 8
      %v1039 = vpop.permute.xlu0 %1038
      %1040 = vrot.lane.b32.xlu0 %v983, 8
      %v1041 = vpop.permute.xlu0 %1040
      %1042 = vrot.lane.b32.xlu0 %v984, 8
      %v1043 = vpop.permute.xlu0 %1042
      %1044 = vrot.lane.b32.xlu0 %v985, 8
      %v1045 = vpop.permute.xlu0 %1044
      %1046 = vrot.lane.b32.xlu0 %v986, 8
      %v1047 = vpop.permute.xlu0 %1046
      %1048 = vrot.lane.b32.xlu0 %v987, 8
      %v1049 = vpop.permute.xlu0 %1048
      %1050 = vrot.lane.b32.xlu0 %v988, 8
      %v1051 = vpop.permute.xlu0 %1050
      %1052 = vrot.lane.b32.xlu0 %v989, 8
      %v1053 = vpop.permute.xlu0 %1052
      %1054 = vrot.lane.b32.xlu0 %v990, 8
      %v1055 = vpop.permute.xlu0 %1054
      %1056 = vrot.lane.b32.xlu0 %v991, 8
      %v1057 = vpop.permute.xlu0 %1056
      %1058 = vrot.lane.b32.xlu0 %v994, 8
      %v1059 = vpop.permute.xlu0 %1058
      %1060 = vrot.lane.b32.xlu0 %v1029, 8
      %v1061 = vpop.permute.xlu0 %1060
      %v1062 = vunpack.c.l.b16 %v342
      %v1063 = vunpack.c.l.b16 %v352
      %v1064 = vunpack.c.l.b16 %v366
      %v1065 = vunpack.c.l.b16 %v376
      %v1066 = vunpack.c.l.b16 %v390
      %v1067 = vunpack.c.l.b16 %v400
      %v1068 = vunpack.c.l.b16 %v414
      %v1069 = vunpack.c.l.b16 %v424
      %v1070 = vunpack.c.l.b16 %v438
      %v1071 = vunpack.c.l.b16 %v448
      %v1072 = vunpack.c.l.b16 %v462
      %v1073 = vunpack.c.l.b16 %v472
      %v1074 = vunpack.c.l.b16 %v486
      %v1075 = vunpack.c.l.b16 %v496
      %v1076 = vunpack.c.l.b16 %v510
      %v1077 = vunpack.c.l.b16 %v520
      %v1078 = vunpack.c.l.b16 %v534
      %v1079 = vunpack.c.l.b16 %v544
      %v1080 = vunpack.c.l.b16 %v558
      %v1081 = vunpack.c.l.b16 %v568
      %v1082 = vunpack.c.l.b16 %v582
      %v1083 = vunpack.c.l.b16 %v592
      %v1084 = vunpack.c.l.b16 %v606
      %v1085 = vunpack.c.l.b16 %v616
      %v1086 = vunpack.c.l.b16 %v630
      %v1087 = vunpack.c.l.b16 %v640
      %v1088 = vunpack.c.l.b16 %v654
      %v1089 = vunpack.c.l.b16 %v664
      %v1090 = vunpack.c.l.b16 %v678
      %v1091 = vunpack.c.l.b16 %v688
      %v1092 = vunpack.c.l.b16 %v702
      %v1093 = vunpack.c.l.b16 %v712
      %v1094 = vpack.c.b16 %v1063, %v1062
      %v1095 = vpack.c.b16 %v1065, %v1064
      %v1096 = vpack.c.b16 %v1067, %v1066
      %v1097 = vpack.c.b16 %v1069, %v1068
      %v1098 = vpack.c.b16 %v1071, %v1070
      %v1099 = vpack.c.b16 %v1073, %v1072
      %v1100 = vpack.c.b16 %v1075, %v1074
      %v1101 = vpack.c.b16 %v1077, %v1076
      %v1102 = vpack.c.b16 %v1079, %v1078
      %v1103 = vpack.c.b16 %v1081, %v1080
      %v1104 = vpack.c.b16 %v1083, %v1082
      %v1105 = vpack.c.b16 %v1085, %v1084
      %v1106 = vpack.c.b16 %v1087, %v1086
      %v1107 = vpack.c.b16 %v1089, %v1088
      %v1108 = vpack.c.b16 %v1091, %v1090
      %v1109 = vpack.c.b16 %v1093, %v1092
      %1110 = vrot.lane.b32.xlu0 %v1094, 12
      %v1111 = vpop.permute.xlu0 %1110
      %1112 = vrot.lane.b32.xlu0 %v1095, 12
      %v1113 = vpop.permute.xlu0 %1112
      %1114 = vrot.lane.b32.xlu0 %v1096, 12
      %v1115 = vpop.permute.xlu0 %1114
      %1116 = vrot.lane.b32.xlu0 %v1097, 12
      %v1117 = vpop.permute.xlu0 %1116
      %1118 = vrot.lane.b32.xlu0 %v1098, 12
      %v1119 = vpop.permute.xlu0 %1118
      %1120 = vrot.lane.b32.xlu0 %v1099, 12
      %v1121 = vpop.permute.xlu0 %1120
      %1122 = vrot.lane.b32.xlu0 %v1100, 12
      %v1123 = vpop.permute.xlu0 %1122
      %1124 = vrot.lane.b32.xlu0 %v1101, 12
      %v1125 = vpop.permute.xlu0 %1124
      %1126 = vrot.lane.b32.xlu0 %v1102, 12
      %v1127 = vpop.permute.xlu0 %1126
      %1128 = vrot.lane.b32.xlu0 %v1103, 12
      %v1129 = vpop.permute.xlu0 %1128
      %1130 = vrot.lane.b32.xlu0 %v1104, 12
      %v1131 = vpop.permute.xlu0 %1130
      %1132 = vrot.lane.b32.xlu0 %v1105, 12
      %v1133 = vpop.permute.xlu0 %1132
      %1134 = vrot.lane.b32.xlu0 %v1106, 12
      %v1135 = vpop.permute.xlu0 %1134
      %1136 = vrot.lane.b32.xlu0 %v1107, 12
      %v1137 = vpop.permute.xlu0 %1136
      %1138 = vrot.lane.b32.xlu0 %v1108, 12
      %v1139 = vpop.permute.xlu0 %1138
      %1140 = vrot.lane.b32.xlu0 %v1109, 12
      %v1141 = vpop.permute.xlu0 %1140
      %v1142 = vunpack.c.l.b16 %v726
      %v1143 = vunpack.c.l.b16 %v736
      %v1144 = vpack.c.b16 %v1143, %v1142
      %1145 = vrot.lane.b32.xlu0 %v1095, 16
      %v1146 = vpop.permute.xlu0 %1145
      %1147 = vrot.lane.b32.xlu0 %v1096, 16
      %v1148 = vpop.permute.xlu0 %1147
      %1149 = vrot.lane.b32.xlu0 %v1097, 16
      %v1150 = vpop.permute.xlu0 %1149
      %1151 = vrot.lane.b32.xlu0 %v1098, 16
      %v1152 = vpop.permute.xlu0 %1151
      %1153 = vrot.lane.b32.xlu0 %v1099, 16
      %v1154 = vpop.permute.xlu0 %1153
      %1155 = vrot.lane.b32.xlu0 %v1100, 16
      %v1156 = vpop.permute.xlu0 %1155
      %1157 = vrot.lane.b32.xlu0 %v1101, 16
      %v1158 = vpop.permute.xlu0 %1157
      %1159 = vrot.lane.b32.xlu0 %v1102, 16
      %v1160 = vpop.permute.xlu0 %1159
      %1161 = vrot.lane.b32.xlu0 %v1103, 16
      %v1162 = vpop.permute.xlu0 %1161
      %1163 = vrot.lane.b32.xlu0 %v1104, 16
      %v1164 = vpop.permute.xlu0 %1163
      %1165 = vrot.lane.b32.xlu0 %v1105, 16
      %v1166 = vpop.permute.xlu0 %1165
      %1167 = vrot.lane.b32.xlu0 %v1106, 16
      %v1168 = vpop.permute.xlu0 %1167
      %1169 = vrot.lane.b32.xlu0 %v1107, 16
      %v1170 = vpop.permute.xlu0 %1169
      %1171 = vrot.lane.b32.xlu0 %v1108, 16
      %v1172 = vpop.permute.xlu0 %1171
      %1173 = vrot.lane.b32.xlu0 %v1109, 16
      %v1174 = vpop.permute.xlu0 %1173
      %1175 = vrot.lane.b32.xlu0 %v1144, 16
      %v1176 = vpop.permute.xlu0 %1175
      %v1177 = vunpack.c.l.b16 %v750
      %v1178 = vunpack.c.l.b16 %v760
      %v1179 = vpack.c.b16 %v1178, %v1177
      %1180 = vrot.lane.b32.xlu0 %v1096, 20
      %v1181 = vpop.permute.xlu0 %1180
      %1182 = vrot.lane.b32.xlu0 %v1097, 20
      %v1183 = vpop.permute.xlu0 %1182
      %1184 = vrot.lane.b32.xlu0 %v1098, 20
      %v1185 = vpop.permute.xlu0 %1184
      %1186 = vrot.lane.b32.xlu0 %v1099, 20
      %v1187 = vpop.permute.xlu0 %1186
      %1188 = vrot.lane.b32.xlu0 %v1100, 20
      %v1189 = vpop.permute.xlu0 %1188
      %1190 = vrot.lane.b32.xlu0 %v1101, 20
      %v1191 = vpop.permute.xlu0 %1190
      %1192 = vrot.lane.b32.xlu0 %v1102, 20
      %v1193 = vpop.permute.xlu0 %1192
      %1194 = vrot.lane.b32.xlu0 %v1103, 20
      %v1195 = vpop.permute.xlu0 %1194
      %1196 = vrot.lane.b32.xlu0 %v1104, 20
      %v1197 = vpop.permute.xlu0 %1196
      %1198 = vrot.lane.b32.xlu0 %v1105, 20
      %v1199 = vpop.permute.xlu0 %1198
      %1200 = vrot.lane.b32.xlu0 %v1106, 20
      %v1201 = vpop.permute.xlu0 %1200
      %1202 = vrot.lane.b32.xlu0 %v1107, 20
      %v1203 = vpop.permute.xlu0 %1202
      %1204 = vrot.lane.b32.xlu0 %v1108, 20
      %v1205 = vpop.permute.xlu0 %1204
      %1206 = vrot.lane.b32.xlu0 %v1109, 20
      %v1207 = vpop.permute.xlu0 %1206
      %1208 = vrot.lane.b32.xlu0 %v1144, 20
      %v1209 = vpop.permute.xlu0 %1208
      %1210 = vrot.lane.b32.xlu0 %v1179, 20
      %v1211 = vpop.permute.xlu0 %1210
      %v1212 = vunpack.c.l.b16 %v815
      %v1213 = vunpack.c.l.b16 %v818
      %v1214 = vunpack.c.l.b16 %v822
      %v1215 = vunpack.c.l.b16 %v825
      %v1216 = vunpack.c.l.b16 %v829
      %v1217 = vunpack.c.l.b16 %v832
      %v1218 = vunpack.c.l.b16 %v836
      %v1219 = vunpack.c.l.b16 %v839
      %v1220 = vunpack.c.l.b16 %v843
      %v1221 = vunpack.c.l.b16 %v846
      %v1222 = vunpack.c.l.b16 %v850
      %v1223 = vunpack.c.l.b16 %v853
      %v1224 = vunpack.c.l.b16 %v857
      %v1225 = vunpack.c.l.b16 %v860
      %v1226 = vunpack.c.l.b16 %v864
      %v1227 = vunpack.c.l.b16 %v867
      %v1228 = vunpack.c.l.b16 %v871
      %v1229 = vunpack.c.l.b16 %v874
      %v1230 = vunpack.c.l.b16 %v878
      %v1231 = vunpack.c.l.b16 %v881
      %v1232 = vunpack.c.l.b16 %v885
      %v1233 = vunpack.c.l.b16 %v888
      %v1234 = vunpack.c.l.b16 %v892
      %v1235 = vunpack.c.l.b16 %v895
      %v1236 = vunpack.c.l.b16 %v899
      %v1237 = vunpack.c.l.b16 %v902
      %v1238 = vunpack.c.l.b16 %v906
      %v1239 = vunpack.c.l.b16 %v909
      %v1240 = vunpack.c.l.b16 %v913
      %v1241 = vunpack.c.l.b16 %v916
      %v1242 = vunpack.c.l.b16 %v920
      %v1243 = vunpack.c.l.b16 %v923
      %v1244 = vpack.c.b16 %v1213, %v1212
      %v1245 = vpack.c.b16 %v1215, %v1214
      %v1246 = vpack.c.b16 %v1217, %v1216
      %v1247 = vpack.c.b16 %v1219, %v1218
      %v1248 = vpack.c.b16 %v1221, %v1220
      %v1249 = vpack.c.b16 %v1223, %v1222
      %v1250 = vpack.c.b16 %v1225, %v1224
      %v1251 = vpack.c.b16 %v1227, %v1226
      %v1252 = vpack.c.b16 %v1229, %v1228
      %v1253 = vpack.c.b16 %v1231, %v1230
      %v1254 = vpack.c.b16 %v1233, %v1232
      %v1255 = vpack.c.b16 %v1235, %v1234
      %v1256 = vpack.c.b16 %v1237, %v1236
      %v1257 = vpack.c.b16 %v1239, %v1238
      %v1258 = vpack.c.b16 %v1241, %v1240
      %v1259 = vpack.c.b16 %v1243, %v1242
      %1260 = vrot.lane.b32.xlu0 %v1244, 24
      %v1261 = vpop.permute.xlu0 %1260
      %1262 = vrot.lane.b32.xlu0 %v1245, 24
      %v1263 = vpop.permute.xlu0 %1262
      %1264 = vrot.lane.b32.xlu0 %v1246, 24
      %v1265 = vpop.permute.xlu0 %1264
      %1266 = vrot.lane.b32.xlu0 %v1247, 24
      %v1267 = vpop.permute.xlu0 %1266
      %1268 = vrot.lane.b32.xlu0 %v1248, 24
      %v1269 = vpop.permute.xlu0 %1268
      %1270 = vrot.lane.b32.xlu0 %v1249, 24
      %v1271 = vpop.permute.xlu0 %1270
      %1272 = vrot.lane.b32.xlu0 %v1250, 24
      %v1273 = vpop.permute.xlu0 %1272
      %1274 = vrot.lane.b32.xlu0 %v1251, 24
      %v1275 = vpop.permute.xlu0 %1274
      %1276 = vrot.lane.b32.xlu0 %v1252, 24
      %v1277 = vpop.permute.xlu0 %1276
      %1278 = vrot.lane.b32.xlu0 %v1253, 24
      %v1279 = vpop.permute.xlu0 %1278
      %1280 = vrot.lane.b32.xlu0 %v1254, 24
      %v1281 = vpop.permute.xlu0 %1280
      %1282 = vrot.lane.b32.xlu0 %v1255, 24
      %v1283 = vpop.permute.xlu0 %1282
      %1284 = vrot.lane.b32.xlu0 %v1256, 24
      %v1285 = vpop.permute.xlu0 %1284
      %1286 = vrot.lane.b32.xlu0 %v1257, 24
      %v1287 = vpop.permute.xlu0 %1286
      %1288 = vrot.lane.b32.xlu0 %v1258, 24
      %v1289 = vpop.permute.xlu0 %1288
      %1290 = vrot.lane.b32.xlu0 %v1259, 24
      %v1291 = vpop.permute.xlu0 %1290
      %v1292 = vunpack.c.l.b16 %v930
      %v1293 = vunpack.c.l.b16 %v933
      %v1294 = vpack.c.b16 %v1293, %v1292
      %1295 = vrot.lane.b32.xlu0 %v1245, 28
      %v1296 = vpop.permute.xlu0 %1295
      %1297 = vrot.lane.b32.xlu0 %v1246, 28
      %v1298 = vpop.permute.xlu0 %1297
      %1299 = vrot.lane.b32.xlu0 %v1247, 28
      %v1300 = vpop.permute.xlu0 %1299
      %1301 = vrot.lane.b32.xlu0 %v1248, 28
      %v1302 = vpop.permute.xlu0 %1301
      %1303 = vrot.lane.b32.xlu0 %v1249, 28
      %v1304 = vpop.permute.xlu0 %1303
      %1305 = vrot.lane.b32.xlu0 %v1250, 28
      %v1306 = vpop.permute.xlu0 %1305
      %1307 = vrot.lane.b32.xlu0 %v1251, 28
      %v1308 = vpop.permute.xlu0 %1307
      %1309 = vrot.lane.b32.xlu0 %v1252, 28
      %v1310 = vpop.permute.xlu0 %1309
      %1311 = vrot.lane.b32.xlu0 %v1253, 28
      %v1312 = vpop.permute.xlu0 %1311
      %1313 = vrot.lane.b32.xlu0 %v1254, 28
      %v1314 = vpop.permute.xlu0 %1313
      %1315 = vrot.lane.b32.xlu0 %v1255, 28
      %v1316 = vpop.permute.xlu0 %1315
      %1317 = vrot.lane.b32.xlu0 %v1256, 28
      %v1318 = vpop.permute.xlu0 %1317
      %1319 = vrot.lane.b32.xlu0 %v1257, 28
      %v1320 = vpop.permute.xlu0 %1319
      %1321 = vrot.lane.b32.xlu0 %v1258, 28
      %v1322 = vpop.permute.xlu0 %1321
      %1323 = vrot.lane.b32.xlu0 %v1259, 28
      %v1324 = vpop.permute.xlu0 %1323
      %1325 = vrot.lane.b32.xlu0 %v1294, 28
      %v1326 = vpop.permute.xlu0 %1325
      %v1327 = vunpack.c.l.b16 %v940
      %v1328 = vunpack.c.l.b16 %v943
      %v1329 = vpack.c.b16 %v1328, %v1327
      %1330 = vrot.lane.b32.xlu0 %v1246, 32
      %v1331 = vpop.permute.xlu0 %1330
      %1332 = vrot.lane.b32.xlu0 %v1247, 32
      %v1333 = vpop.permute.xlu0 %1332
      %1334 = vrot.lane.b32.xlu0 %v1248, 32
      %v1335 = vpop.permute.xlu0 %1334
      %1336 = vrot.lane.b32.xlu0 %v1249, 32
      %v1337 = vpop.permute.xlu0 %1336
      %1338 = vrot.lane.b32.xlu0 %v1250, 32
      %v1339 = vpop.permute.xlu0 %1338
      %1340 = vrot.lane.b32.xlu0 %v1251, 32
      %v1341 = vpop.permute.xlu0 %1340
      %1342 = vrot.lane.b32.xlu0 %v1252, 32
      %v1343 = vpop.permute.xlu0 %1342
      %1344 = vrot.lane.b32.xlu0 %v1253, 32
      %v1345 = vpop.permute.xlu0 %1344
      %1346 = vrot.lane.b32.xlu0 %v1254, 32
      %v1347 = vpop.permute.xlu0 %1346
      %1348 = vrot.lane.b32.xlu0 %v1255, 32
      %v1349 = vpop.permute.xlu0 %1348
      %1350 = vrot.lane.b32.xlu0 %v1256, 32
      %v1351 = vpop.permute.xlu0 %1350
      %1352 = vrot.lane.b32.xlu0 %v1257, 32
      %v1353 = vpop.permute.xlu0 %1352
      %1354 = vrot.lane.b32.xlu0 %v1258, 32
      %v1355 = vpop.permute.xlu0 %1354
      %1356 = vrot.lane.b32.xlu0 %v1259, 32
      %v1357 = vpop.permute.xlu0 %1356
      %1358 = vrot.lane.b32.xlu0 %v1294, 32
      %v1359 = vpop.permute.xlu0 %1358
      %1360 = vrot.lane.b32.xlu0 %v1329, 32
      %v1361 = vpop.permute.xlu0 %1360
      %vm1362 = vcmask 31744
      %v1365 = vsel %vm1362, %v976, %v996
      %v1368 = vsel %vm1362, %v977, %v998
      %v1371 = vsel %vm1362, %v978, %v1000
      %v1374 = vsel %vm1362, %v979, %v1002
      %v1377 = vsel %vm1362, %v980, %v1004
      %v1380 = vsel %vm1362, %v981, %v1006
      %v1383 = vsel %vm1362, %v982, %v1008
      %v1386 = vsel %vm1362, %v983, %v1010
      %v1389 = vsel %vm1362, %v984, %v1012
      %v1392 = vsel %vm1362, %v985, %v1014
      %v1395 = vsel %vm1362, %v986, %v1016
      %v1398 = vsel %vm1362, %v987, %v1018
      %v1401 = vsel %vm1362, %v988, %v1020
      %v1404 = vsel %vm1362, %v989, %v1022
      %v1407 = vsel %vm1362, %v990, %v1024
      %v1410 = vsel %vm1362, %v991, %v1026
      %vm1411 = vcmask 64512
      %v1413 = vsel %vm1411, %v1365, %v1031
      %v1415 = vsel %vm1411, %v1368, %v1033
      %v1417 = vsel %vm1411, %v1371, %v1035
      %v1419 = vsel %vm1411, %v1374, %v1037
      %v1421 = vsel %vm1411, %v1377, %v1039
      %v1423 = vsel %vm1411, %v1380, %v1041
      %v1425 = vsel %vm1411, %v1383, %v1043
      %v1427 = vsel %vm1411, %v1386, %v1045
      %v1429 = vsel %vm1411, %v1389, %v1047
      %v1431 = vsel %vm1411, %v1392, %v1049
      %v1433 = vsel %vm1411, %v1395, %v1051
      %v1435 = vsel %vm1411, %v1398, %v1053
      %v1437 = vsel %vm1411, %v1401, %v1055
      %v1439 = vsel %vm1411, %v1404, %v1057
      %v1441 = vsel %vm1411, %v1407, %v1059
      %v1443 = vsel %vm1411, %v1410, %v1061
      %vm1444 = vcmask 97280
      %v1446 = vsel %vm1444, %v1413, %v1111
      %v1448 = vsel %vm1444, %v1415, %v1113
      %v1450 = vsel %vm1444, %v1417, %v1115
      %v1452 = vsel %vm1444, %v1419, %v1117
      %v1454 = vsel %vm1444, %v1421, %v1119
      %v1456 = vsel %vm1444, %v1423, %v1121
      %v1458 = vsel %vm1444, %v1425, %v1123
      %v1460 = vsel %vm1444, %v1427, %v1125
      %v1462 = vsel %vm1444, %v1429, %v1127
      %v1464 = vsel %vm1444, %v1431, %v1129
      %v1466 = vsel %vm1444, %v1433, %v1131
      %v1468 = vsel %vm1444, %v1435, %v1133
      %v1470 = vsel %vm1444, %v1437, %v1135
      %v1472 = vsel %vm1444, %v1439, %v1137
      %v1474 = vsel %vm1444, %v1441, %v1139
      %v1476 = vsel %vm1444, %v1443, %v1141
      %vm1477 = vcmask 130048
      %v1479 = vsel %vm1477, %v1446, %v1146
      %v1481 = vsel %vm1477, %v1448, %v1148
      %v1483 = vsel %vm1477, %v1450, %v1150
      %v1485 = vsel %vm1477, %v1452, %v1152
      %v1487 = vsel %vm1477, %v1454, %v1154
      %v1489 = vsel %vm1477, %v1456, %v1156
      %v1491 = vsel %vm1477, %v1458, %v1158
      %v1493 = vsel %vm1477, %v1460, %v1160
      %v1495 = vsel %vm1477, %v1462, %v1162
      %v1497 = vsel %vm1477, %v1464, %v1164
      %v1499 = vsel %vm1477, %v1466, %v1166
      %v1501 = vsel %vm1477, %v1468, %v1168
      %v1503 = vsel %vm1477, %v1470, %v1170
      %v1505 = vsel %vm1477, %v1472, %v1172
      %v1507 = vsel %vm1477, %v1474, %v1174
      %v1509 = vsel %vm1477, %v1476, %v1176
      %vm1510 = vcmask 162816
      %v1512 = vsel %vm1510, %v1479, %v1181
      %v1514 = vsel %vm1510, %v1481, %v1183
      %v1516 = vsel %vm1510, %v1483, %v1185
      %v1518 = vsel %vm1510, %v1485, %v1187
      %v1520 = vsel %vm1510, %v1487, %v1189
      %v1522 = vsel %vm1510, %v1489, %v1191
      %v1524 = vsel %vm1510, %v1491, %v1193
      %v1526 = vsel %vm1510, %v1493, %v1195
      %v1528 = vsel %vm1510, %v1495, %v1197
      %v1530 = vsel %vm1510, %v1497, %v1199
      %v1532 = vsel %vm1510, %v1499, %v1201
      %v1534 = vsel %vm1510, %v1501, %v1203
      %v1536 = vsel %vm1510, %v1503, %v1205
      %v1538 = vsel %vm1510, %v1505, %v1207
      %v1540 = vsel %vm1510, %v1507, %v1209
      %v1542 = vsel %vm1510, %v1509, %v1211
      %vm1543 = vcmask 195584
      %v1545 = vsel %vm1543, %v1512, %v1261
      %v1547 = vsel %vm1543, %v1514, %v1263
      %v1549 = vsel %vm1543, %v1516, %v1265
      %v1551 = vsel %vm1543, %v1518, %v1267
      %v1553 = vsel %vm1543, %v1520, %v1269
      %v1555 = vsel %vm1543, %v1522, %v1271
      %v1557 = vsel %vm1543, %v1524, %v1273
      %v1559 = vsel %vm1543, %v1526, %v1275
      %v1561 = vsel %vm1543, %v1528, %v1277
      %v1563 = vsel %vm1543, %v1530, %v1279
      %v1565 = vsel %vm1543, %v1532, %v1281
      %v1567 = vsel %vm1543, %v1534, %v1283
      %v1569 = vsel %vm1543, %v1536, %v1285
      %v1571 = vsel %vm1543, %v1538, %v1287
      %v1573 = vsel %vm1543, %v1540, %v1289
      %v1575 = vsel %vm1543, %v1542, %v1291
      %vm1576 = vcmask 228352
      %v1578 = vsel %vm1576, %v1545, %v1296
      %v1580 = vsel %vm1576, %v1547, %v1298
      %v1582 = vsel %vm1576, %v1549, %v1300
      %v1584 = vsel %vm1576, %v1551, %v1302
      %v1586 = vsel %vm1576, %v1553, %v1304
      %v1588 = vsel %vm1576, %v1555, %v1306
      %v1590 = vsel %vm1576, %v1557, %v1308
      %v1592 = vsel %vm1576, %v1559, %v1310
      %v1594 = vsel %vm1576, %v1561, %v1312
      %v1596 = vsel %vm1576, %v1563, %v1314
      %v1598 = vsel %vm1576, %v1565, %v1316
      %v1600 = vsel %vm1576, %v1567, %v1318
      %v1602 = vsel %vm1576, %v1569, %v1320
      %v1604 = vsel %vm1576, %v1571, %v1322
      %v1606 = vsel %vm1576, %v1573, %v1324
      %v1608 = vsel %vm1576, %v1575, %v1326
      %vm1609 = vcmask 261120
      %v1611 = vsel %vm1609, %v1578, %v1331
      %v1614 = vsel %vm1609, %v1580, %v1333
      %v1617 = vsel %vm1609, %v1582, %v1335
      %v1620 = vsel %vm1609, %v1584, %v1337
      %v1623 = vsel %vm1609, %v1586, %v1339
      %v1626 = vsel %vm1609, %v1588, %v1341
      %v1629 = vsel %vm1609, %v1590, %v1343
      %v1632 = vsel %vm1609, %v1592, %v1345
      %v1635 = vsel %vm1609, %v1594, %v1347
      %v1638 = vsel %vm1609, %v1596, %v1349
      %v1641 = vsel %vm1609, %v1598, %v1351
      %v1644 = vsel %vm1609, %v1600, %v1353
      %v1647 = vsel %vm1609, %v1602, %v1355
      %v1650 = vsel %vm1609, %v1604, %v1357
      %v1653 = vsel %vm1609, %v1606, %v1359
      %v1656 = vsel %vm1609, %v1608, %v1361
      %1658 = vxpose.xlu0.c.b16.start [1/8] %v1611, 128
      %1659 = vxpose.xlu0.c.b16.cont [2/8] %v1614, 128
      %1660 = vxpose.xlu0.c.b16.cont [3/8] %v1617, 128
      %1661 = vxpose.xlu0.c.b16.cont [4/8] %v1620, 128
      %1662 = vxpose.xlu0.c.b16.cont [5/8] %v1623, 128
      %1663 = vxpose.xlu0.c.b16.cont [6/8] %v1626, 128
      %1664 = vxpose.xlu0.c.b16.cont [7/8] %v1629, 128
      %1665 = vxpose.xlu0.c.b16.end [8/8] %v1632, 128
      %v1666 = vpop.trf.xlu0
      %v1667 = vpop.trf.xlu0
      %v1668 = vpop.trf.xlu0
      %v1669 = vpop.trf.xlu0
      %v1670 = vpop.trf.xlu0
      %v1671 = vpop.trf.xlu0
      %v1672 = vpop.trf.xlu0
      %v1673 = vpop.trf.xlu0
      %1674 = vxpose.xlu0.c.b16.start [1/8] %v1635, 128
      %1675 = vxpose.xlu0.c.b16.cont [2/8] %v1638, 128
      %1676 = vxpose.xlu0.c.b16.cont [3/8] %v1641, 128
      %1677 = vxpose.xlu0.c.b16.cont [4/8] %v1644, 128
      %1678 = vxpose.xlu0.c.b16.cont [5/8] %v1647, 128
      %1679 = vxpose.xlu0.c.b16.cont [6/8] %v1650, 128
      %1680 = vxpose.xlu0.c.b16.cont [7/8] %v1653, 128
      %1681 = vxpose.xlu0.c.b16.end [8/8] %v1656, 128
      %v1682 = vpop.trf.xlu0
      %v1683 = vpop.trf.xlu0
      %v1684 = vpop.trf.xlu0
      %v1685 = vpop.trf.xlu0
      %v1686 = vpop.trf.xlu0
      %v1687 = vpop.trf.xlu0
      %v1688 = vpop.trf.xlu0
      %v1689 = vpop.trf.xlu0
      %v1696 = vunpack.c.l.b16 %v1666
      %v1697 = vunpack.c.l.b16 %v1682
      %v1698 = vunpack.c.h.b16 %v1666
      %v1699 = vunpack.c.h.b16 %v1682
      %v1700 = vunpack.c.l.b16 %v1667
      %v1701 = vunpack.c.l.b16 %v1683
      %v1702 = vunpack.c.h.b16 %v1667
      %v1703 = vunpack.c.h.b16 %v1683
      %v1704 = vunpack.c.l.b16 %v1668
      %v1705 = vunpack.c.l.b16 %v1684
      %v1706 = vpack.c.b16 %v1697, %v1696
      %v1707 = vpack.c.b16 %v1699, %v1698
      %v1708 = vpack.c.b16 %v1701, %v1700
      %v1709 = vpack.c.b16 %v1703, %v1702
      %v1710 = vpack.c.b16 %v1705, %v1704
      %1716 = vst [vmem:[#allocation2] sm:$0xff] %v1706
      %1717 = vst [vmem:[#allocation2 + $0x8] sm:$0xff] %v1707
      %1718 = vst [vmem:[#allocation2 + $0x10] sm:$0xff] %v1708
      %1719 = vst [vmem:[#allocation2 + $0x18] sm:$0xff] %v1709
      %1720 = vst [vmem:[#allocation2 + $0x20] sm:$0x33] %v1710
      %v1721 = vld [vmem:[%s253] sm:$0xf]
      %v1722 = vld [vmem:[#allocation2] sm:$0xff]
      %v1723 = vld [vmem:[#allocation2 + $0x8] sm:$0xff]
      %v1724 = vld [vmem:[#allocation2 + $0x10] sm:$0xff]
      %v1725 = vld [vmem:[#allocation2 + $0x18] sm:$0xff]
      %v1726 = vld [vmem:[#allocation2 + $0x20] sm:$0x33]
      %v1732 = vunpack.c.l.b16 %v1722
      %v1733 = vunpack.c.h.b16 %v1722
      %v1734 = vunpack.c.l.b16 %v1723
      %v1735 = vunpack.c.h.b16 %v1723
      %v1736 = vunpack.c.l.b16 %v1724
      %v1737 = vunpack.c.h.b16 %v1724
      %v1738 = vunpack.c.l.b16 %v1725
      %v1739 = vunpack.c.h.b16 %v1725
      %v1740 = vunpack.c.l.b16 %v1726
      %v1741 = vunpack.c.h.b16 %v1726
      %v1742 = vpack.c.b16 %v1734, %v1732
      %v1743 = vpack.c.b16 %v1735, %v1733
      %v1744 = vpack.c.b16 %v1738, %v1736
      %v1745 = vpack.c.b16 %v1739, %v1737
      %v1746 = vpack.c.b16 %v1740, %v1740
      %v1747 = vpack.c.b16 %v1741, %v1741
      %vm1752 = vcmask 293888
      %v1754 = vsel %vm1752, %v1721, 0
      %vm1756 = vcmask 1041408
      %v1758 = vsel %vm1756, %v1746, 0
      %v1761 = vsel %vm1756, %v1747, 0
      %1763 = vmatprep.subr.bf16.mxu0 %v1743
      %1764 = vmatpush1.bf16.msra.mxu0 %v1742
      %1765 = vmatprep.subr.bf16.mxu0 %v1745
      %1766 = vmatpush1.bf16.msra.mxu0 %v1744
      %1767 = vmatprep.subr.bf16.mxu0 %v1761
      %1768 = vmatpush1.bf16.msra.mxu0 %v1758
      %1769 = vmatprep.subr.bf16.mxu0 0
      %1770 = vmatpush1.bf16.msra.mxu0 0
      %1771 = vmatprep.subr.bf16.mxu0 0
      %1772 = vmatpush1.bf16.msra.mxu0 0
      %1773 = vmatprep.subr.bf16.mxu0 0
      %1774 = vmatpush1.bf16.msra.mxu0 0
      %1775 = vmatprep.subr.bf16.mxu0 0
      %1776 = vmatpush1.bf16.msra.mxu0 0
      %1777 = vmatprep.subr.bf16.mxu0 0
      %1778 = vmatpush1.bf16.msra.mxu0 0
      %1779 = vmatprep.subr.bf16.mxu0 0
      %1780 = vmatpush1.bf16.msra.mxu0 0
      %1781 = vmatprep.subr.bf16.mxu0 0
      %1782 = vmatpush1.bf16.msra.mxu0 0
      %1783 = vmatprep.subr.bf16.mxu0 0
      %1784 = vmatpush1.bf16.msra.mxu0 0
      %1785 = vmatprep.subr.bf16.mxu0 0
      %1786 = vmatpush1.bf16.msra.mxu0 0
      %1787 = vmatprep.subr.bf16.mxu0 0
      %1788 = vmatpush1.bf16.msra.mxu0 0
      %1789 = vmatprep.subr.bf16.mxu0 0
      %1790 = vmatpush1.bf16.msra.mxu0 0
      %1791 = vmatprep.subr.bf16.mxu0 0
      %1792 = vmatpush1.bf16.msra.mxu0 0
      %1793 = vmatprep.subr.bf16.mxu0 0
      %1794 = vmatpush1.bf16.msra.mxu0 0
      %1795 = vmatprep.mubr.bf16.mxu0 0
      %1796 = vmatmul.mubr.bf16.gmra.mrb[0].mxu0 %v1754
      %v1797 = vpop.f32.mrb[0].mxu0
      %v1798 = vadd.f32 0.0, %v1797
      %v1799 = vpop.f32.mrb[0].mxu0
      %v1800 = vadd.f32 0.0, %v1799
      %v1801 = vpop.f32.mrb[0].mxu0
      %v1802 = vpop.f32.mrb[0].mxu0
      %1803 = vdwg.mxu0
      %v1804 = vld [vmem:[%s257] sm:$0xff]
      %1806 = vset.pattern.permute.xlu0 0
      %1807 = vperm.xlu0 %1806, %v1804
      %v1808 = vpop.permute.xlu0 %1807
      %v1810 = vmul.f32 %v1798, %v1808
      %v1811 = vmul.f32 %v1800, %v1808
      %v1812 = vld [vmem:[%s261] sm:$0xff]
      %1814 = vset.pattern.permute.xlu0 0
      %1815 = vperm.xlu0 %1814, %v1812
      %v1816 = vpop.permute.xlu0 %1815
      %v1818 = vadd.f32 %v1810, %v1816
      %v1819 = vadd.f32 %v1811, %v1816
      %v1820 = vmax.f32 %v1818, 0.0
      %v1821 = vmax.f32 %v1819, 0.0
      %v1822 = vpack.c.bf16 %v1820, %v1820
      %v1823 = vpack.c.bf16 %v1821, %v1821
      %v1826 = vunpack.c.l.b16 %v1822
      %v1827 = vunpack.c.l.b16 %v1823
      %v1828 = vpack.c.b16 %v1827, %v1826
      %1830 = vst [vmem:[%s270] sm:$0xff] %v1828
      %p1831 = scmp.lt.s32.totalorder %s20, 1
      %s1832 = scalar_select %p1831, %s20, 1
      %p1833 = scmp.lt.s32.totalorder %s19, 0
      %s1834 = scalar_select %p1833, %s19, 0
      %s1835 = smul.addr %s1834, 2
      %s1836 = smul.addr %s1832, 2
      %s1837 = sadd.s32 %s1835, %s1836
      %s1838 = smul.addr %s1837, 4
      %s1839 = scalar_lea.vmem %s4, %s1838
      // Predicated region
      $region37: #{conv_bn_relu.1} parent=35 // pred_check
        %p1840 = pneg %p151
      $region38: #{conv_bn_relu.1} parent=35 // pred_check_branch
        %1842 = sbr.rel (%p1840) target = $region40
      $region39: #{conv_bn_relu.1} parent=35 // pred_region
        _
      $region40: #{conv_bn_relu.1} parent=35 // pred_fallthru
        _
    $region36: #{conv_bn_relu.1} parent=5 // pred_fallthru
      _
    %p1843 = scmp.le.s32.totalorder 2, %s10
    // Predicated region
    $region41: #{conv_bn_relu.1} parent=5 // pred_check
      %p1844 = pneg %p1843
    $region42: #{conv_bn_relu.1} parent=5 // pred_check_branch
      %1846 = sbr.rel (%p1844) target = $region44
    $region43: #{conv_bn_relu.1} parent=5 // pred_region
      %s1847 = ssub.s32 %s10, 2
      // Predicated region
      $region45: #{conv_bn_relu.1} parent=43 // pred_check
        %p1848 = pneg %p157
      $region46: #{conv_bn_relu.1} parent=43 // pred_check_branch
        %1850 = sbr.rel (%p1848) target = $region48
      $region47: #{conv_bn_relu.1} parent=43 // pred_region
        %p1851 = scmp.lt.s32.totalorder %s22, 1
        %s1852 = scalar_select %p1851, %s22, 1
        %p1853 = scmp.lt.s32.totalorder %s21, 0
        %s1854 = scalar_select %p1853, %s21, 0
        %s1855 = smul.addr %s1854, 2
        %s1856 = smul.addr %s1852, 2
        %s1857 = sadd.s32 %s1855, %s1856
        %s1858 = smul.addr %s1857, 4
        %s1859 = scalar_lea.vmem %s4, %s1858
      $region48: #{conv_bn_relu.1} parent=43 // pred_fallthru
        _
    $region44: #{conv_bn_relu.1} parent=5 // pred_fallthru
      _
  $region6: #{conv_bn_relu.1} parent=0 // loop_footer
    %s14 = sadd.s32 1, %s10
  $region7: #{conv_bn_relu.1} parent=0 // loop_footer_branch
    %9 = sbr.rel target = $region3
  $region8: #{conv_bn_relu.1} parent=0 // loop_exit
    _

</llo_original>
